<compile_context>
chip_gen: v6e
topology: v6e:2x2x1
jax: 0.10.0
libtpu: 0.0.40
codegen_flags: <defaults>
</compile_context>

<pallas_src>
import functools
import math

import jax
import jax.numpy as jnp
from jax.experimental import pallas as pl
from jax.experimental.pallas import tpu as pltpu


def _mha_kernel(x_ref, w_ref, b_ref, o_ref, *, num_heads):
    # x_ref: (1, T, H)          -- one batch element
    # w_ref: (H, 3*heads*D)     -- fused [Wq | Wk | Wv], grid-invariant
    # b_ref: (1, 3*heads*D)     -- fused [bq | bk | bv], grid-invariant
    # o_ref: (1, T, heads*D)    -- output already in concat (head-major) layout
    T = x_ref.shape[1]
    P = w_ref.shape[1] // 3          # num_attn_proj = heads * head_size
    D = P // num_heads               # attention_head_size (== H for this module)

    x = x_ref[0]                                                      # (T, H)

    # Single fused QKV projection: one lane-dense (T,H)x(H,3P) MXU matmul.
    qkv = jnp.dot(x, w_ref[...], preferred_element_type=jnp.float32) + b_ref[...]  # (T, 3P)

    # Split into per-head blocks (heads, T, D) for batched attention.
    def heads_first(z):
        return z.reshape(T, num_heads, D).transpose(1, 0, 2)

    q = heads_first(qkv[:, :P])          # (heads, T, D)
    k = heads_first(qkv[:, P:2 * P])     # (heads, T, D)
    v = heads_first(qkv[:, 2 * P:])      # (heads, T, D)

    scale = 1.0 / math.sqrt(float(D))
    # Batched q @ k^T contracting the last dims (no explicit transpose of k).
    s = jnp.einsum("htd,hsd->hts", q, k,
                   preferred_element_type=jnp.float32) * scale        # (heads, T, T)

    # Row-wise softmax.  Non-causal; eval-mode dropout = identity.
    # TODO(synk): optional attention_mask path ((1 - mask) * -10000 added to
    # scores before the row max) not wired; forward default is mask=None.
    m = s.max(axis=-1, keepdims=True)
    e = jnp.exp(s - m)                                                # (heads, T, T)
    l = e.sum(axis=-1, keepdims=True)                                 # (heads, T, 1)

    # Unnormalized PV matmul, then normalize the (heads, T, D) result — one
    # fewer full pass over the (heads, T, T) tile.
    y = jnp.einsum("hts,hsd->htd", e, v,
                   preferred_element_type=jnp.float32)                # (heads, T, D)

    # EUP approximate reciprocal + one Newton-Raphson refinement: divide stays
    # off the VPU while keeping ~f32 accuracy for the softmax normalizer.
    r = pl.reciprocal(l, approx=True)
    r = r * (2.0 - l * r)
    y = y * r

    # Emit directly in (T, heads*D) concat layout -> 128-lane-dense store.
    o_ref[0] = y.transpose(1, 0, 2).reshape(T, P).astype(o_ref.dtype)


def multihead_attention(hidden_states, params, num_heads):
    """hidden_states: (B, T, H) f32.  Returns (B, T, num_heads * H) f32."""
    B, T, H = hidden_states.shape
    D = H                      # attention_head_size == num_embed_hidden
    P = num_heads * D          # num_attn_proj

    # Fuse the three projections so the kernel does one matmul and only two
    # parameter DMAs (which are grid-invariant -> fetched once).
    wqkv = jnp.concatenate([params["wq"], params["wk"], params["wv"]], axis=1)   # (H, 3P)
    bqkv = jnp.concatenate([params["bq"], params["bk"], params["bv"]])[None, :]  # (1, 3P)

    kernel = functools.partial(_mha_kernel, num_heads=num_heads)

    return pl.pallas_call(
        kernel,
        out_shape=jax.ShapeDtypeStruct((B, T, P), jnp.float32),
        grid_spec=pltpu.PrefetchScalarGridSpec(
            num_scalar_prefetch=0,
            grid=(B,),
            in_specs=[
                pl.BlockSpec((1, T, H), lambda b: (b, 0, 0)),
                pl.BlockSpec((H, 3 * P), lambda b: (0, 0)),   # grid-invariant weights
                pl.BlockSpec((1, 3 * P), lambda b: (0, 0)),   # grid-invariant bias
            ],
            out_specs=pl.BlockSpec((1, T, P), lambda b: (b, 0, 0)),
        ),
        compiler_params=pltpu.CompilerParams(
            dimension_semantics=("parallel",),   # batch axis -> both TCs on v7x
        ),
    )(hidden_states, wqkv, bqkv)


def _reference(hidden_states, params, num_heads):
    """Plain-JAX reference mirroring the PyTorch forward (eval mode, no mask)."""
    B, T, H = hidden_states.shape
    D = H
    q = hidden_states @ params["wq"] + params["bq"]
    k = hidden_states @ params["wk"] + params["bk"]
    v = hidden_states @ params["wv"] + params["bv"]
    q = q.reshape(B, T, num_heads, D).transpose(0, 2, 1, 3)
    k = k.reshape(B, T, num_heads, D).transpose(0, 2, 1, 3)
    v = v.reshape(B, T, num_heads, D).transpose(0, 2, 1, 3)
    s = (q @ k.transpose(0, 1, 3, 2)) * (1.0 / math.sqrt(D))
    p = jax.nn.softmax(s, axis=-1)
    y = p @ v
    return y.transpose(0, 2, 1, 3).reshape(B, T, num_heads * D)


if __name__ == "__main__":
    # Config: num_embed_hidden=32, num_attention_heads=4 -> num_attn_proj=128
    B, T, H, NUM_HEADS = 2, 8, 32, 4
    NUM_ATTN_PROJ = H * NUM_HEADS

    key = jax.random.PRNGKey(0)
    kx, kq, kk, kv, kbq, kbk, kbv = jax.random.split(key, 7)

    # Deterministic nn.Linear-style init (uniform in [-1/sqrt(H), 1/sqrt(H)]).
    bound = 1.0 / math.sqrt(H)
    params = {
        "wq": jax.random.uniform(kq, (H, NUM_ATTN_PROJ), jnp.float32, -bound, bound),
        "wk": jax.random.uniform(kk, (H, NUM_ATTN_PROJ), jnp.float32, -bound, bound),
        "wv": jax.random.uniform(kv, (H, NUM_ATTN_PROJ), jnp.float32, -bound, bound),
        "bq": jax.random.uniform(kbq, (NUM_ATTN_PROJ,), jnp.float32, -bound, bound),
        "bk": jax.random.uniform(kbk, (NUM_ATTN_PROJ,), jnp.float32, -bound, bound),
        "bv": jax.random.uniform(kbv, (NUM_ATTN_PROJ,), jnp.float32, -bound, bound),
    }
    hidden_states = jax.random.normal(kx, (B, T, H), jnp.float32)

    out = multihead_attention(hidden_states, params, NUM_HEADS)
    out = jax.block_until_ready(out)

    ref = _reference(hidden_states, params, NUM_HEADS)
    assert out.shape == (B, T, NUM_ATTN_PROJ), out.shape
    max_err = float(jnp.abs(out - ref).max())
    assert jnp.allclose(out, ref, atol=1e-4, rtol=1e-4), max_err

    print("KERNEL_OK")
</pallas_src>

<mosaic_0001>
module attributes {stable_mosaic.version = 11 : i64} {
  func.func @_mha_kernel(%arg0: i32, %arg1: memref<1x8x32xf32, #tpu.memory_space<vmem>>, %arg2: memref<32x384xf32, #tpu.memory_space<vmem>>, %arg3: memref<1x384xf32, #tpu.memory_space<vmem>>, %arg4: memref<1x8x128xf32, #tpu.memory_space<vmem>>) attributes {dimension_semantics = [#tpu.dimension_semantics<parallel>], iteration_bounds = array<i64: 2>, scalar_prefetch = 0 : i64, scratch_operands = 0 : i64, tpu.core_type = #tpu.core_type<tc>, window_params = [{transform_indices = @transform_0, window_bounds = array<i64: 1, 8, 32>}, {pipeline_mode = #tpu.pipeline_mode<synchronous>, transform_indices = @transform_1, window_bounds = array<i64: 32, 384>}, {pipeline_mode = #tpu.pipeline_mode<synchronous>, transform_indices = @transform_2, window_bounds = array<i64: 1, 384>}, {transform_indices = @transform_3, window_bounds = array<i64: 1, 8, 128>}]} {
    %c0 = arith.constant 0 : index
    %c0_0 = arith.constant 0 : index
    %c0_1 = arith.constant 0 : index
    %0 = vector.load %arg1[%c0, %c0_0, %c0_1] : memref<1x8x32xf32, #tpu.memory_space<vmem>>, vector<1x8x32xf32>
    %1 = vector.shape_cast %0 : vector<1x8x32xf32> to vector<8x32xf32>
    %c0_2 = arith.constant 0 : index
    %c0_3 = arith.constant 0 : index
    %2 = vector.load %arg2[%c0_2, %c0_3] : memref<32x384xf32, #tpu.memory_space<vmem>>, vector<32x384xf32>
    %cst = arith.constant dense<0.000000e+00> : vector<8x384xf32>
    %3 = tpu.matmul %1, %2, %cst {dimension_numbers = #tpu.dot_dimension_numbers<[1], [0], [0], [1], [0, 0, 1, 1], [], []>} : vector<8x32xf32>, vector<32x384xf32>, vector<8x384xf32> -> vector<8x384xf32>
    %c0_4 = arith.constant 0 : index
    %c0_5 = arith.constant 0 : index
    %4 = vector.load %arg3[%c0_4, %c0_5] : memref<1x384xf32, #tpu.memory_space<vmem>>, vector<1x384xf32>
    %5 = vector.broadcast %4 : vector<1x384xf32> to vector<8x384xf32>
    %6 = arith.addf %3, %5 : vector<8x384xf32>
    %7 = vector.extract_strided_slice %6 {offsets = [0, 0], sizes = [8, 128], strides = [1, 1]} : vector<8x384xf32> to vector<8x128xf32>
    %8 = vector.shape_cast %7 : vector<8x128xf32> to vector<8x4x32xf32>
    %9 = tpu.transpose %8, [1, 0, 2] : vector<8x4x32xf32> -> vector<4x8x32xf32>
    %10 = vector.extract_strided_slice %6 {offsets = [0, 128], sizes = [8, 128], strides = [1, 1]} : vector<8x384xf32> to vector<8x128xf32>
    %11 = vector.shape_cast %10 : vector<8x128xf32> to vector<8x4x32xf32>
    %12 = tpu.transpose %11, [1, 0, 2] : vector<8x4x32xf32> -> vector<4x8x32xf32>
    %13 = vector.extract_strided_slice %6 {offsets = [0, 256], sizes = [8, 128], strides = [1, 1]} : vector<8x384xf32> to vector<8x128xf32>
    %14 = vector.shape_cast %13 : vector<8x128xf32> to vector<8x4x32xf32>
    %15 = tpu.transpose %14, [1, 0, 2] : vector<8x4x32xf32> -> vector<4x8x32xf32>
    "tpu.trace_start"() <{level = 10 : i32, message = "htd,hsd->hts"}> : () -> ()
    %cst_6 = arith.constant dense<0.000000e+00> : vector<4x8x8xf32>
    %16 = tpu.matmul %9, %12, %cst_6 {dimension_numbers = #tpu.dot_dimension_numbers<[2], [2], [1], [1], [0, 0, 0, 1, 1, 1], [0], [0]>} : vector<4x8x32xf32>, vector<4x8x32xf32>, vector<4x8x8xf32> -> vector<4x8x8xf32>
    "tpu.trace_stop"() : () -> ()
    %cst_7 = arith.constant 0.176776692 : f32
    %17 = vector.broadcast %cst_7 : f32 to vector<4x8x8xf32>
    %18 = arith.mulf %16, %17 : vector<4x8x8xf32>
    %cst_8 = arith.constant dense<0xFF800000> : vector<4x8xf32>
    %19 = vector.multi_reduction <maximumf>, %18, %cst_8 [2] : vector<4x8x8xf32> to vector<4x8xf32>
    %20 = vector.shape_cast %19 : vector<4x8xf32> to vector<4x8x1xf32>
    %21 = vector.broadcast %20 : vector<4x8x1xf32> to vector<4x8x8xf32>
    %22 = arith.subf %18, %21 : vector<4x8x8xf32>
    %23 = math.exp %22 : vector<4x8x8xf32>
    %cst_9 = arith.constant dense<0.000000e+00> : vector<4x8xf32>
    %24 = vector.multi_reduction <add>, %23, %cst_9 [2] : vector<4x8x8xf32> to vector<4x8xf32>
    %25 = vector.shape_cast %24 : vector<4x8xf32> to vector<4x8x1xf32>
    "tpu.trace_start"() <{level = 10 : i32, message = "hts,hsd->htd"}> : () -> ()
    %cst_10 = arith.constant dense<0.000000e+00> : vector<4x8x32xf32>
    %26 = tpu.matmul %23, %15, %cst_10 {dimension_numbers = #tpu.dot_dimension_numbers<[2], [1], [1], [2], [0, 0, 0, 1, 1, 2], [0], [0]>} : vector<4x8x8xf32>, vector<4x8x32xf32>, vector<4x8x32xf32> -> vector<4x8x32xf32>
    "tpu.trace_stop"() : () -> ()
    %27 = tpu.reciprocal %25 {approx = true} : vector<4x8x1xf32> -> vector<4x8x1xf32>
    %28 = arith.mulf %25, %27 : vector<4x8x1xf32>
    %cst_11 = arith.constant 2.000000e+00 : f32
    %29 = vector.broadcast %cst_11 : f32 to vector<4x8x1xf32>
    %30 = arith.subf %29, %28 : vector<4x8x1xf32>
    %31 = arith.mulf %27, %30 : vector<4x8x1xf32>
    %32 = vector.broadcast %31 : vector<4x8x1xf32> to vector<4x8x32xf32>
    %33 = arith.mulf %26, %32 : vector<4x8x32xf32>
    %34 = tpu.transpose %33, [1, 0, 2] : vector<4x8x32xf32> -> vector<8x4x32xf32>
    %35 = vector.shape_cast %34 : vector<8x4x32xf32> to vector<8x128xf32>
    %c0_12 = arith.constant 0 : index
    %c0_13 = arith.constant 0 : index
    %c0_14 = arith.constant 0 : index
    %36 = vector.load %arg4[%c0_12, %c0_13, %c0_14] : memref<1x8x128xf32, #tpu.memory_space<vmem>>, vector<1x8x128xf32>
    %37 = vector.shape_cast %36 : vector<1x8x128xf32> to vector<8x128xf32>
    %38 = vector.shape_cast %35 : vector<8x128xf32> to vector<1x8x128xf32>
    tpu.vector_store %arg4[%c0_12, %c0_13, %c0_14], %38 {strides = array<i32>} : memref<1x8x128xf32, #tpu.memory_space<vmem>>, vector<1x8x128xf32>,
    return
  }
  func.func @transform_0(%arg0: i32) -> (i32, i32, i32) {
    %c0_i32 = arith.constant 0 : i32
    %c0_i32_0 = arith.constant 0 : i32
    %c0_i32_1 = arith.constant 0 : i32
    return %arg0, %c0_i32, %c0_i32_0 : i32, i32, i32
  }
  func.func @transform_1(%arg0: i32) -> (i32, i32) {
    %c0_i32 = arith.constant 0 : i32
    %c0_i32_0 = arith.constant 0 : i32
    %c0_i32_1 = arith.constant 0 : i32
    return %c0_i32, %c0_i32_0 : i32, i32
  }
  func.func @transform_2(%arg0: i32) -> (i32, i32) {
    %c0_i32 = arith.constant 0 : i32
    %c0_i32_0 = arith.constant 0 : i32
    %c0_i32_1 = arith.constant 0 : i32
    return %c0_i32, %c0_i32_0 : i32, i32
  }
  func.func @transform_3(%arg0: i32) -> (i32, i32, i32) {
    %c0_i32 = arith.constant 0 : i32
    %c0_i32_0 = arith.constant 0 : i32
    %c0_i32_1 = arith.constant 0 : i32
    return %arg0, %c0_i32, %c0_i32_0 : i32, i32, i32
  }
}

</mosaic_0001>

<llo_original>
// kernel: tpu_custom_call.1
$region0: #{tpu_custom_call.1}
  #allocation0 [shape = 'u32[]', space=smem, size = 0x4, offset = 0x4, fixed_abs, tag = 'smem constant byte address 0x4 - core index']
  #allocation1 [shape = 'u32[144,128]{1,0:T(1,128)}', space=vmem, size = 0x12000, scoped, tag = 'internal scratch']
  %s0 = inlined_call_operand.hbm [shape: f32[2,8,32], index: 0, kind: input, shape index: {}]
  %s1 = inlined_call_operand.hbm [shape: f32[32,384], index: 1, kind: input, shape index: {}]
  %s2 = inlined_call_operand.vmem [shape: f32[1,384], index: 2, kind: input, shape index: {}]
  %s3 = inlined_call_operand.hbm [shape: f32[2,8,128], index: 3, kind: output, shape index: {}]
  %s4 = sld [smem:[#allocation0]]
  $region53: #{tpu_custom_call.1} parent=0
    _
  %s6 = ssub.s32 1, %s4
  %s7 = scalar_select 0, %s6, %s4
  $region1: #{tpu_custom_call.1} parent=0
    #allocation2 [shape = 'u8[8192]{0}', space=vmem, size = 0x2000, scoped, tag = 'input window, operand 0']
    #allocation3 [shape = 's32[2]{0}', space=sflag, size = 0x8, scoped, tag = 'scoped memory for tpu_custom_call.1']
    #allocation4 [shape = 's32[2]{0}', space=sflag, size = 0x8, scoped, tag = 'scoped memory for tpu_custom_call.1']
    #allocation5 [shape = 'u8[49152]{0}', space=vmem, size = 0xc000, scoped, tag = 'input window, operand 1, single buffered']
    #allocation6 [shape = 's32[1]{0}', space=sflag, size = 0x4, scoped, tag = 'scoped memory for tpu_custom_call.1']
    #allocation7 [shape = 'u8[8192]{0}', space=vmem, size = 0x2000, scoped, tag = 'output window, operand 0']
    %8 = vsyncpa [#allocation3], 0
    %s9 = scalar_lea.sflag [#allocation3], 1
    %10 = vsyncpa %s9, 0
    %11 = vsyncpa [#allocation6], 0
    %12 = vsyncpa [#allocation4], 0
    %s13 = scalar_lea.sflag [#allocation4], 1
    %14 = vsyncpa %s13, 0
    loop: start=0, step=1, limit=4
    $region2: #{tpu_custom_call.1} parent=1 // loop_pre_header
      _
    $region3: #{tpu_custom_call.1} parent=1 // loop_header
      %s16 = sphi 0, %s20
      %p17 = scmp.ge.s32.totalorder %s16, 4
      %s26 = sphi 0, %s28
      %s29 = sphi 0, %s26
      %s30 = sphi 0, %s29
      %s46 = sphi 0, %s30
      %s50 = sphi 0, %s50
      %s52 = sphi 0, %s50
      %s53 = sphi 0, %s52
      %s67 = sphi 0, %s53
      %s71 = sphi 0, %s71
      %s73 = sphi 0, %s71
      %s74 = sphi 0, %s73
      %s88 = sphi 0, %s74
      %s94 = sphi 0, %s96
      %s97 = sphi 0, %s94
      %s98 = sphi 0, %s97
      %s114 = sphi 0, %s98
    $region4: #{tpu_custom_call.1} parent=1 // loop_header_branch
      %19 = sbr.rel (%p17) target = $region8
    $region5: #{tpu_custom_call.1} parent=1 // loop_body
      %s21 = ssub.s32 %s16, 1
      %s22 = ssub.s32 %s16, 2
      %s23 = sadd.s32 %s16, 1
      %s24 = ssub.s32 %s16, %s23
      %p25 = scmp.eq.s32.totalorder %s24, 0
      %s27 = sadd.s32 %s26, 1
      %s28 = scalar_select %p25, %s26, %s27
      %p31 = pneg %p25
      %p32 = scmp.eq.s32.totalorder %s16, 1
      %p33 = por %p31, %p32
      %p34 = scmp.ne.s32.totalorder %s26, %s29
      %p35 = scmp.eq.s32.totalorder %s16, 0
      %p36 = por %p34, %p35
      %p37 = scmp.ne.s32.totalorder %s26, %s29
      %p38 = scmp.eq.s32.totalorder %s21, 1
      %p39 = por %p37, %p38
      %p40 = scmp.ne.s32.totalorder %s29, %s30
      %p41 = scmp.eq.s32.totalorder %s21, 0
      %p42 = por %p40, %p41
      %p43 = scmp.ne.s32.totalorder %s29, %s30
      %p44 = scmp.eq.s32.totalorder %s22, 1
      %p45 = por %p43, %p44
      %p47 = scmp.ne.s32.totalorder %s30, %s46
      %p48 = scmp.eq.s32.totalorder %s22, 0
      %p49 = por %p47, %p48
      %s51 = sadd.s32 %s50, 1
      %p54 = scmp.eq.s32.totalorder %s16, 1
      %p55 = scmp.ne.s32.totalorder %s50, %s52
      %p56 = scmp.eq.s32.totalorder %s16, 0
      %p57 = por %p55, %p56
      %p58 = scmp.ne.s32.totalorder %s50, %s52
      %p59 = scmp.eq.s32.totalorder %s21, 1
      %p60 = por %p58, %p59
      %p61 = scmp.ne.s32.totalorder %s52, %s53
      %p62 = scmp.eq.s32.totalorder %s21, 0
      %p63 = por %p61, %p62
      %p64 = scmp.ne.s32.totalorder %s52, %s53
      %p65 = scmp.eq.s32.totalorder %s22, 1
      %p66 = por %p64, %p65
      %p68 = scmp.ne.s32.totalorder %s53, %s67
      %p69 = scmp.eq.s32.totalorder %s22, 0
      %p70 = por %p68, %p69
      %s72 = sadd.s32 %s71, 1
      %p75 = scmp.eq.s32.totalorder %s16, 1
      %p76 = scmp.ne.s32.totalorder %s71, %s73
      %p77 = scmp.eq.s32.totalorder %s16, 0
      %p78 = por %p76, %p77
      %p79 = scmp.ne.s32.totalorder %s71, %s73
      %p80 = scmp.eq.s32.totalorder %s21, 1
      %p81 = por %p79, %p80
      %p82 = scmp.ne.s32.totalorder %s73, %s74
      %p83 = scmp.eq.s32.totalorder %s21, 0
      %p84 = por %p82, %p83
      %p85 = scmp.ne.s32.totalorder %s73, %s74
      %p86 = scmp.eq.s32.totalorder %s22, 1
      %p87 = por %p85, %p86
      %p89 = scmp.ne.s32.totalorder %s74, %s88
      %p90 = scmp.eq.s32.totalorder %s22, 0
      %p91 = por %p89, %p90
      %s92 = ssub.s32 %s16, %s23
      %p93 = scmp.eq.s32.totalorder %s92, 0
      %s95 = sadd.s32 %s94, 1
      %s96 = scalar_select %p93, %s94, %s95
      %p99 = pneg %p93
      %p100 = scmp.eq.s32.totalorder %s16, 1
      %p101 = por %p99, %p100
      %p102 = scmp.ne.s32.totalorder %s94, %s97
      %p103 = scmp.eq.s32.totalorder %s16, 0
      %p104 = por %p102, %p103
      %p105 = scmp.ne.s32.totalorder %s94, %s97
      %p106 = scmp.eq.s32.totalorder %s21, 1
      %p107 = por %p105, %p106
      %p108 = scmp.ne.s32.totalorder %s97, %s98
      %p109 = scmp.eq.s32.totalorder %s21, 0
      %p110 = por %p108, %p109
      %p111 = scmp.ne.s32.totalorder %s97, %s98
      %p112 = scmp.eq.s32.totalorder %s22, 1
      %p113 = por %p111, %p112
      %p115 = scmp.ne.s32.totalorder %s98, %s114
      %p116 = scmp.eq.s32.totalorder %s22, 0
      %p117 = por %p115, %p116
      %p118 = scmp.le.s32.totalorder 1, %s16
      %p119 = scmp.lt.s32.totalorder %s16, 3
      %p120 = pnand %p118, %p119
      %p121 = pneg %p120
      // Predicated region
      $region9: #{tpu_custom_call.1} parent=5 // pred_check
        _
      $region10: #{tpu_custom_call.1} parent=5 // pred_check_branch
        %123 = sbr.rel (%p120) target = $region12
      $region11: #{tpu_custom_call.1} parent=5 // pred_region
        %s124 = ssub.s32 %s16, 1
        // Predicated region
        $region13: #{tpu_custom_call.1} parent=11 // pred_check
          %p125 = pneg %p63
        $region14: #{tpu_custom_call.1} parent=11 // pred_check_branch
          %127 = sbr.rel (%p125) target = $region16
        $region15: #{tpu_custom_call.1} parent=11 // pred_region
          %s129 = ssub.s32 1536, 1536
          %130 = vsyncadd [#allocation6], %s129
          %s131 = sshll.u32 [#allocation5], 4
          %s132 = int_to_ptr.vmem [resolvable:$true] %s131
          %137 = dma.hbm_to_vmem [thread:$0]  %s1, 1536, %s132, [#allocation6], 384, 384, 24
        $region16: #{tpu_custom_call.1} parent=11 // pred_fallthru
          _
        // Predicated region
        $region17: #{tpu_custom_call.1} parent=11 // pred_check
          %p138 = pneg %p84
        $region18: #{tpu_custom_call.1} parent=11 // pred_check_branch
          %140 = sbr.rel (%p138) target = $region20
        $region19: #{tpu_custom_call.1} parent=11 // pred_region
          _
        $region20: #{tpu_custom_call.1} parent=11 // pred_fallthru
          _
      $region12: #{tpu_custom_call.1} parent=5 // pred_fallthru
        _
      %p141 = scmp.lt.s32.totalorder %s16, 2
      // Predicated region
      $region21: #{tpu_custom_call.1} parent=5 // pred_check
        %p142 = pneg %p141
      $region22: #{tpu_custom_call.1} parent=5 // pred_check_branch
        %144 = sbr.rel (%p142) target = $region24
      $region23: #{tpu_custom_call.1} parent=5 // pred_region
        // Predicated region
        $region25: #{tpu_custom_call.1} parent=23 // pred_check
          %p145 = pneg %p36
        $region26: #{tpu_custom_call.1} parent=23 // pred_check_branch
          %147 = sbr.rel (%p145) target = $region28
        $region27: #{tpu_custom_call.1} parent=23 // pred_region
          %s148 = sand.u32 %s26, 1
          %s149 = scalar_lea.sflag [#allocation3], %s148
          %s150 = sand.u32 %s26, 1
          %s151 = smul.addr %s150, 8
          %s152 = scalar_lea.vmem [#allocation2], %s151
          %s154 = ssub.s32 128, 128
          %155 = vsyncadd %s149, %s154
          %s156 = smul.addr %s16, 128
          %s157 = scalar_lea.hbm %s0, %s156
          %s159 = sshll.u32 %s152, 4
          %s160 = int_to_ptr.vmem [resolvable:$true] %s159
          %162 = dma.hbm_to_vmem [thread:$0]  %s157, 128, %s160, %s149
        $region28: #{tpu_custom_call.1} parent=23 // pred_fallthru
          _
      $region24: #{tpu_custom_call.1} parent=5 // pred_fallthru
        _
      %p163 = scmp.le.s32.totalorder 1, %s16
      %p164 = scmp.lt.s32.totalorder %s16, 3
      %p165 = pnand %p163, %p164
      %p166 = pneg %p165
      // Predicated region
      $region29: #{tpu_custom_call.1} parent=5 // pred_check
        _
      $region30: #{tpu_custom_call.1} parent=5 // pred_check_branch
        %168 = sbr.rel (%p165) target = $region32
      $region31: #{tpu_custom_call.1} parent=5 // pred_region
        %s169 = ssub.s32 %s16, 1
        %s170 = sand.u32 %s29, 1
        %s171 = scalar_lea.sflag [#allocation3], %s170
        %s172 = sand.u32 %s29, 1
        %s173 = smul.addr %s172, 8
        %s174 = scalar_lea.vmem [#allocation2], %s173
        // Predicated region
        $region33: #{tpu_custom_call.1} parent=31 // pred_check
          %p175 = pneg %p42
        $region34: #{tpu_custom_call.1} parent=31 // pred_check_branch
          %177 = sbr.rel (%p175) target = $region36
        $region35: #{tpu_custom_call.1} parent=31 // pred_region
          %178 = dma.done %s171, 128
        $region36: #{tpu_custom_call.1} parent=31 // pred_fallthru
          _
        // Predicated region
        $region37: #{tpu_custom_call.1} parent=31 // pred_check
          %p179 = pneg %p63
        $region38: #{tpu_custom_call.1} parent=31 // pred_check_branch
          %181 = sbr.rel (%p179) target = $region40
        $region39: #{tpu_custom_call.1} parent=31 // pred_region
          %182 = dma.done [#allocation6], 1536
        $region40: #{tpu_custom_call.1} parent=31 // pred_fallthru
          _
        %s183 = sand.u32 %s29, 1
        %s184 = scalar_lea.sflag [#allocation3], %s183
        %s185 = sand.u32 %s29, 1
        %s186 = smul.addr %s185, 8
        %s187 = scalar_lea.vmem [#allocation2], %s186
        %p188 = pneg %p42
        %p189 = pneg %p39
        %p190 = pneg %p63
        %p191 = pneg %p60
        %p192 = pneg %p84
        %p193 = pneg %p81
        %p194 = pneg %p110
        %p195 = pneg %p107
        %s196 = sand.u32 %s97, 1
        %s197 = scalar_lea.sflag [#allocation4], %s196
        %s198 = sand.u32 %s97, 1
        %s199 = smul.addr %s198, 8
        %s200 = scalar_lea.vmem [#allocation7], %s199
        %v201 = vld [vmem:[%s174] sm:$0xff]
        %v202 = vld [vmem:[#allocation5] sm:$0xff]
        %v203 = vld [vmem:[#allocation5 + $0x8] sm:$0xff]
        %v204 = vld [vmem:[#allocation5 + $0x10] sm:$0xff]
        %v205 = vld [vmem:[#allocation5 + $0x18] sm:$0xff]
        %v206 = vld [vmem:[#allocation5 + $0x20] sm:$0xff]
        %v207 = vld [vmem:[#allocation5 + $0x28] sm:$0xff]
        %v208 = vld [vmem:[#allocation5 + $0x30] sm:$0xff]
        %v209 = vld [vmem:[#allocation5 + $0x38] sm:$0xff]
        %v210 = vld [vmem:[#allocation5 + $0x40] sm:$0xff]
        %v211 = vld [vmem:[#allocation5 + $0x48] sm:$0xff]
        %v212 = vld [vmem:[#allocation5 + $0x50] sm:$0xff]
        %v213 = vld [vmem:[#allocation5 + $0x58] sm:$0xff]
        %v214 = vld [vmem:[%s2] sm:$0x7]
        %v216 = vlaneseq
        %v217 = vshrl.u32 %v216, 7
        %v218 = vsub.s32 0, %v217
        %v219 = vrot.slane %v214, %v218
        %v220 = vlaneseq
        %v221 = vshrl.u32 %v220, 7
        %v222 = vsub.s32 1, %v221
        %v223 = vrot.slane %v214, %v222
        %v224 = vlaneseq
        %v225 = vshrl.u32 %v224, 7
        %v226 = vsub.s32 2, %v225
        %v227 = vrot.slane %v214, %v226
        %vm231 = vcmask 261120
        %v233 = vsel %vm231, %v201, 0
        %235 = vmatprep.subr.mxu0 0.0
        %236 = vmatpush1.msra.mxu0 0.0
        %237 = vmatprep.subr.mxu0 0.0
        %238 = vmatpush1.msra.mxu0 0.0
        %239 = vmatprep.subr.mxu0 0.0
        %240 = vmatpush1.msra.mxu0 0.0
        %241 = vmatprep.subr.mxu0 0.0
        %242 = vmatpush1.msra.mxu0 0.0
        %243 = vmatprep.subr.mxu0 0.0
        %244 = vmatpush1.msra.mxu0 0.0
        %245 = vmatprep.subr.mxu0 0.0
        %246 = vmatpush1.msra.mxu0 0.0
        %247 = vmatprep.subr.mxu0 0.0
        %248 = vmatpush1.msra.mxu0 0.0
        %249 = vmatprep.subr.mxu0 0.0
        %250 = vmatpush1.msra.mxu0 0.0
        %251 = vmatprep.subr.mxu0 0.0
        %252 = vmatpush1.msra.mxu0 0.0
        %253 = vmatprep.subr.mxu0 0.0
        %254 = vmatpush1.msra.mxu0 0.0
        %255 = vmatprep.subr.mxu0 0.0
        %256 = vmatpush1.msra.mxu0 0.0
        %257 = vmatprep.subr.mxu0 0.0
        %258 = vmatpush1.msra.mxu0 0.0
        %259 = vmatprep.subr.mxu0 %v212
        %260 = vmatpush1.msra.mxu0 %v211
        %261 = vmatprep.subr.mxu0 %v209
        %262 = vmatpush1.msra.mxu0 %v208
        %263 = vmatprep.subr.mxu0 %v206
        %264 = vmatpush1.msra.mxu0 %v205
        %265 = vmatprep.subr.mxu0 %v203
        %266 = vmatpush1.msra.mxu0 %v202
        %267 = vmatprep.subr.mxu0 0.0
        %268 = vmatpush2.msra.mxu0 0.0
        %269 = vmatprep.subr.mxu0 0.0
        %270 = vmatpush2.msra.mxu0 0.0
        %271 = vmatprep.subr.mxu0 0.0
        %272 = vmatpush2.msra.mxu0 0.0
        %273 = vmatprep.subr.mxu0 0.0
        %274 = vmatpush2.msra.mxu0 0.0
        %275 = vmatprep.subr.mxu0 0.0
        %276 = vmatpush2.msra.mxu0 0.0
        %277 = vmatprep.subr.mxu0 0.0
        %278 = vmatpush2.msra.mxu0 0.0
        %279 = vmatprep.subr.mxu0 0.0
        %280 = vmatpush2.msra.mxu0 0.0
        %281 = vmatprep.subr.mxu0 0.0
        %282 = vmatpush2.msra.mxu0 0.0
        %283 = vmatprep.subr.mxu0 0.0
        %284 = vmatpush2.msra.mxu0 0.0
        %285 = vmatprep.subr.mxu0 0.0
        %286 = vmatpush2.msra.mxu0 0.0
        %287 = vmatprep.subr.mxu0 0.0
        %288 = vmatpush2.msra.mxu0 0.0
        %289 = vmatprep.subr.mxu0 0.0
        %290 = vmatpush2.msra.mxu0 0.0
        %291 = vmatprep.subr.mxu0 0.0
        %292 = vmatpush2.msra.mxu0 0.0
        %293 = vmatprep.subr.mxu0 0.0
        %294 = vmatpush2.msra.mxu0 0.0
        %295 = vmatprep.subr.mxu0 0.0
        %296 = vmatpush2.msra.mxu0 0.0
        %297 = vmatprep.subr.mxu0 0.0
        %298 = vmatpush2.msra.mxu0 0.0
        %299 = vmatprep.mubr.f32.mxu0 0.0
        %300 = vmatmul.mubr.f32.gmra.mxu0 %v233
        %v301 = vpop.f32.mrf.mxu0
        %v302 = vadd.f32 %v219, %v301
        %v303 = vpop.f32.mrf.mxu0
        %v304 = vadd.f32 %v223, %v303
        %305 = vdwg.mxu0
        %306 = vmatprep.subr.mxu0 0.0
        %307 = vmatpush1.msra.mxu0 0.0
        %308 = vmatprep.subr.mxu0 0.0
        %309 = vmatpush1.msra.mxu0 0.0
        %310 = vmatprep.subr.mxu0 0.0
        %311 = vmatpush1.msra.mxu0 0.0
        %312 = vmatprep.subr.mxu0 0.0
        %313 = vmatpush1.msra.mxu0 0.0
        %314 = vmatprep.subr.mxu0 0.0
        %315 = vmatpush1.msra.mxu0 0.0
        %316 = vmatprep.subr.mxu0 0.0
        %317 = vmatpush1.msra.mxu0 0.0
        %318 = vmatprep.subr.mxu0 0.0
        %319 = vmatpush1.msra.mxu0 0.0
        %320 = vmatprep.subr.mxu0 0.0
        %321 = vmatpush1.msra.mxu0 0.0
        %322 = vmatprep.subr.mxu0 0.0
        %323 = vmatpush1.msra.mxu0 0.0
        %324 = vmatprep.subr.mxu0 0.0
        %325 = vmatpush1.msra.mxu0 0.0
        %326 = vmatprep.subr.mxu0 0.0
        %327 = vmatpush1.msra.mxu0 0.0
        %328 = vmatprep.subr.mxu0 0.0
        %329 = vmatpush1.msra.mxu0 0.0
        %330 = vmatprep.subr.mxu0 0.0
        %331 = vmatpush1.msra.mxu0 %v213
        %332 = vmatprep.subr.mxu0 0.0
        %333 = vmatpush1.msra.mxu0 %v210
        %334 = vmatprep.subr.mxu0 0.0
        %335 = vmatpush1.msra.mxu0 %v207
        %336 = vmatprep.subr.mxu0 0.0
        %337 = vmatpush1.msra.mxu0 %v204
        %338 = vmatprep.subr.mxu0 0.0
        %339 = vmatpush2.msra.mxu0 0.0
        %340 = vmatprep.subr.mxu0 0.0
        %341 = vmatpush2.msra.mxu0 0.0
        %342 = vmatprep.subr.mxu0 0.0
        %343 = vmatpush2.msra.mxu0 0.0
        %344 = vmatprep.subr.mxu0 0.0
        %345 = vmatpush2.msra.mxu0 0.0
        %346 = vmatprep.subr.mxu0 0.0
        %347 = vmatpush2.msra.mxu0 0.0
        %348 = vmatprep.subr.mxu0 0.0
        %349 = vmatpush2.msra.mxu0 0.0
        %350 = vmatprep.subr.mxu0 0.0
        %351 = vmatpush2.msra.mxu0 0.0
        %352 = vmatprep.subr.mxu0 0.0
        %353 = vmatpush2.msra.mxu0 0.0
        %354 = vmatprep.subr.mxu0 0.0
        %355 = vmatpush2.msra.mxu0 0.0
        %356 = vmatprep.subr.mxu0 0.0
        %357 = vmatpush2.msra.mxu0 0.0
        %358 = vmatprep.subr.mxu0 0.0
        %359 = vmatpush2.msra.mxu0 0.0
        %360 = vmatprep.subr.mxu0 0.0
        %361 = vmatpush2.msra.mxu0 0.0
        %362 = vmatprep.subr.mxu0 0.0
        %363 = vmatpush2.msra.mxu0 0.0
        %364 = vmatprep.subr.mxu0 0.0
        %365 = vmatpush2.msra.mxu0 0.0
        %366 = vmatprep.subr.mxu0 0.0
        %367 = vmatpush2.msra.mxu0 0.0
        %368 = vmatprep.subr.mxu0 0.0
        %369 = vmatpush2.msra.mxu0 0.0
        %370 = vmatprep.mubr.f32.mxu0 0.0
        %371 = vmatmul.mubr.f32.gmra.mxu0 %v233
        %v372 = vpop.f32.mrf.mxu0
        %v373 = vadd.f32 %v227, %v372
        %v374 = vpop.f32.mrf.mxu0
        %375 = vdwg.mxu0
        %377 = vrot.lane.b32.xlu0 %v302, 96
        %v378 = vpop.permute.xlu0 %377
        %380 = vrot.lane.b32.xlu0 %v302, 64
        %v381 = vpop.permute.xlu0 %380
        %383 = vrot.lane.b32.xlu0 %v302, 32
        %v384 = vpop.permute.xlu0 %383
        %v386 = vcombine.low %v302, %v381
        %v387 = vcombine.high %v302, %v381
        %v389 = vunpack.c.l.s4 1983009808
        %v390 = vunpack.c.0.s8 %v389
        %v391 = vlaneseq
        %v392 = vshrl.u32 %v391, 7
        %v393 = vsub.s32 %v390, %v392
        %v394 = vrot.slane %v386, %v393
        %v396 = vunpack.c.l.s4 1983009808
        %v397 = vunpack.c.0.s8 %v396
        %v398 = vlaneseq
        %v399 = vshrl.u32 %v398, 7
        %v400 = vsub.s32 %v397, %v399
        %v401 = vrot.slane %v387, %v400
        %v402 = vcombine.low %v378, %v384
        %v403 = vcombine.high %v378, %v384
        %v405 = vunpack.c.l.s4 1983009808
        %v406 = vunpack.c.0.s8 %v405
        %v407 = vlaneseq
        %v408 = vshrl.u32 %v407, 7
        %v409 = vsub.s32 %v406, %v408
        %v410 = vrot.slane %v402, %v409
        %v412 = vunpack.c.l.s4 1983009808
        %v413 = vunpack.c.0.s8 %v412
        %v414 = vlaneseq
        %v415 = vshrl.u32 %v414, 7
        %v416 = vsub.s32 %v413, %v415
        %v417 = vrot.slane %v403, %v416
        %v418 = vcombine.low %v394, %v410
        %v419 = vcombine.high %v394, %v410
        %v421 = vunpack.c.l.s4 1934713408
        %v422 = vunpack.c.0.s8 %v421
        %v423 = vlaneseq
        %v424 = vshrl.u32 %v423, 7
        %v425 = vsub.s32 %v422, %v424
        %v426 = vrot.slane %v418, %v425
        %v428 = vunpack.c.l.s4 1934713408
        %v429 = vunpack.c.0.s8 %v428
        %v430 = vlaneseq
        %v431 = vshrl.u32 %v430, 7
        %v432 = vsub.s32 %v429, %v431
        %v433 = vrot.slane %v419, %v432
        %v434 = vcombine.low %v401, %v417
        %v435 = vcombine.high %v401, %v417
        %v437 = vunpack.c.l.s4 1934713408
        %v438 = vunpack.c.0.s8 %v437
        %v439 = vlaneseq
        %v440 = vshrl.u32 %v439, 7
        %v441 = vsub.s32 %v438, %v440
        %v442 = vrot.slane %v434, %v441
        %v444 = vunpack.c.l.s4 1934713408
        %v445 = vunpack.c.0.s8 %v444
        %v446 = vlaneseq
        %v447 = vshrl.u32 %v446, 7
        %v448 = vsub.s32 %v445, %v447
        %v449 = vrot.slane %v435, %v448
        %v450 = vcombine.high %v426, 0.0
        %v451 = vcombine.high %v433, 0.0
        %v452 = vcombine.high %v442, 0.0
        %v453 = vcombine.high %v449, 0.0
        %v454 = vcombine.low %v426, %v433
        %v456 = vunpack.c.l.s4 1983009808
        %v457 = vunpack.c.0.s8 %v456
        %v458 = vlaneseq
        %v459 = vshrl.u32 %v458, 7
        %v460 = vsub.s32 %v457, %v459
        %v461 = vrot.slane %v454, %v460
        %v462 = vcombine.low %v450, %v451
        %v464 = vunpack.c.l.s4 1983009808
        %v465 = vunpack.c.0.s8 %v464
        %v466 = vlaneseq
        %v467 = vshrl.u32 %v466, 7
        %v468 = vsub.s32 %v465, %v467
        %v469 = vrot.slane %v462, %v468
        %v470 = vcombine.low %v442, %v449
        %v472 = vunpack.c.l.s4 1983009808
        %v473 = vunpack.c.0.s8 %v472
        %v474 = vlaneseq
        %v475 = vshrl.u32 %v474, 7
        %v476 = vsub.s32 %v473, %v475
        %v477 = vrot.slane %v470, %v476
        %v478 = vcombine.low %v452, %v453
        %v480 = vunpack.c.l.s4 1983009808
        %v481 = vunpack.c.0.s8 %v480
        %v482 = vlaneseq
        %v483 = vshrl.u32 %v482, 7
        %v484 = vsub.s32 %v481, %v483
        %v485 = vrot.slane %v478, %v484
        %v486 = vcombine.low %v461, %v469
        %v487 = vcombine.high %v461, %v469
        %v489 = vunpack.c.l.s4 1934713408
        %v490 = vunpack.c.0.s8 %v489
        %v491 = vlaneseq
        %v492 = vshrl.u32 %v491, 7
        %v493 = vsub.s32 %v490, %v492
        %v494 = vrot.slane %v486, %v493
        %v496 = vunpack.c.l.s4 1934713408
        %v497 = vunpack.c.0.s8 %v496
        %v498 = vlaneseq
        %v499 = vshrl.u32 %v498, 7
        %v500 = vsub.s32 %v497, %v499
        %v501 = vrot.slane %v487, %v500
        %v502 = vcombine.low %v477, %v485
        %v503 = vcombine.high %v477, %v485
        %v505 = vunpack.c.l.s4 1934713408
        %v506 = vunpack.c.0.s8 %v505
        %v507 = vlaneseq
        %v508 = vshrl.u32 %v507, 7
        %v509 = vsub.s32 %v506, %v508
        %v510 = vrot.slane %v502, %v509
        %v512 = vunpack.c.l.s4 1934713408
        %v513 = vunpack.c.0.s8 %v512
        %v514 = vlaneseq
        %v515 = vshrl.u32 %v514, 7
        %v516 = vsub.s32 %v513, %v515
        %v517 = vrot.slane %v503, %v516
        %v518 = vcombine.low %v494, %v510
        %v519 = vcombine.high %v494, %v510
        %v520 = vcombine.low %v501, %v517
        %v521 = vcombine.high %v501, %v517
        %523 = vrot.lane.b32.xlu0 %v304, 96
        %v524 = vpop.permute.xlu0 %523
        %526 = vrot.lane.b32.xlu0 %v304, 64
        %v527 = vpop.permute.xlu0 %526
        %529 = vrot.lane.b32.xlu0 %v304, 32
        %v530 = vpop.permute.xlu0 %529
        %v532 = vcombine.low %v304, %v527
        %v533 = vcombine.high %v304, %v527
        %v535 = vunpack.c.l.s4 1983009808
        %v536 = vunpack.c.0.s8 %v535
        %v537 = vlaneseq
        %v538 = vshrl.u32 %v537, 7
        %v539 = vsub.s32 %v536, %v538
        %v540 = vrot.slane %v532, %v539
        %v542 = vunpack.c.l.s4 1983009808
        %v543 = vunpack.c.0.s8 %v542
        %v544 = vlaneseq
        %v545 = vshrl.u32 %v544, 7
        %v546 = vsub.s32 %v543, %v545
        %v547 = vrot.slane %v533, %v546
        %v548 = vcombine.low %v524, %v530
        %v549 = vcombine.high %v524, %v530
        %v551 = vunpack.c.l.s4 1983009808
        %v552 = vunpack.c.0.s8 %v551
        %v553 = vlaneseq
        %v554 = vshrl.u32 %v553, 7
        %v555 = vsub.s32 %v552, %v554
        %v556 = vrot.slane %v548, %v555
        %v558 = vunpack.c.l.s4 1983009808
        %v559 = vunpack.c.0.s8 %v558
        %v560 = vlaneseq
        %v561 = vshrl.u32 %v560, 7
        %v562 = vsub.s32 %v559, %v561
        %v563 = vrot.slane %v549, %v562
        %v564 = vcombine.low %v540, %v556
        %v565 = vcombine.high %v540, %v556
        %v567 = vunpack.c.l.s4 1934713408
        %v568 = vunpack.c.0.s8 %v567
        %v569 = vlaneseq
        %v570 = vshrl.u32 %v569, 7
        %v571 = vsub.s32 %v568, %v570
        %v572 = vrot.slane %v564, %v571
        %v574 = vunpack.c.l.s4 1934713408
        %v575 = vunpack.c.0.s8 %v574
        %v576 = vlaneseq
        %v577 = vshrl.u32 %v576, 7
        %v578 = vsub.s32 %v575, %v577
        %v579 = vrot.slane %v565, %v578
        %v580 = vcombine.low %v547, %v563
        %v581 = vcombine.high %v547, %v563
        %v583 = vunpack.c.l.s4 1934713408
        %v584 = vunpack.c.0.s8 %v583
        %v585 = vlaneseq
        %v586 = vshrl.u32 %v585, 7
        %v587 = vsub.s32 %v584, %v586
        %v588 = vrot.slane %v580, %v587
        %v590 = vunpack.c.l.s4 1934713408
        %v591 = vunpack.c.0.s8 %v590
        %v592 = vlaneseq
        %v593 = vshrl.u32 %v592, 7
        %v594 = vsub.s32 %v591, %v593
        %v595 = vrot.slane %v581, %v594
        %v596 = vcombine.high %v572, 0.0
        %v597 = vcombine.high %v579, 0.0
        %v598 = vcombine.high %v588, 0.0
        %v599 = vcombine.high %v595, 0.0
        %v600 = vcombine.low %v572, %v579
        %v602 = vunpack.c.l.s4 1983009808
        %v603 = vunpack.c.0.s8 %v602
        %v604 = vlaneseq
        %v605 = vshrl.u32 %v604, 7
        %v606 = vsub.s32 %v603, %v605
        %v607 = vrot.slane %v600, %v606
        %v608 = vcombine.low %v596, %v597
        %v610 = vunpack.c.l.s4 1983009808
        %v611 = vunpack.c.0.s8 %v610
        %v612 = vlaneseq
        %v613 = vshrl.u32 %v612, 7
        %v614 = vsub.s32 %v611, %v613
        %v615 = vrot.slane %v608, %v614
        %v616 = vcombine.low %v588, %v595
        %v618 = vunpack.c.l.s4 1983009808
        %v619 = vunpack.c.0.s8 %v618
        %v620 = vlaneseq
        %v621 = vshrl.u32 %v620, 7
        %v622 = vsub.s32 %v619, %v621
        %v623 = vrot.slane %v616, %v622
        %v624 = vcombine.low %v598, %v599
        %v626 = vunpack.c.l.s4 1983009808
        %v627 = vunpack.c.0.s8 %v626
        %v628 = vlaneseq
        %v629 = vshrl.u32 %v628, 7
        %v630 = vsub.s32 %v627, %v629
        %v631 = vrot.slane %v624, %v630
        %v632 = vcombine.low %v607, %v615
        %v633 = vcombine.high %v607, %v615
        %v635 = vunpack.c.l.s4 1934713408
        %v636 = vunpack.c.0.s8 %v635
        %v637 = vlaneseq
        %v638 = vshrl.u32 %v637, 7
        %v639 = vsub.s32 %v636, %v638
        %v640 = vrot.slane %v632, %v639
        %v642 = vunpack.c.l.s4 1934713408
        %v643 = vunpack.c.0.s8 %v642
        %v644 = vlaneseq
        %v645 = vshrl.u32 %v644, 7
        %v646 = vsub.s32 %v643, %v645
        %v647 = vrot.slane %v633, %v646
        %v648 = vcombine.low %v623, %v631
        %v649 = vcombine.high %v623, %v631
        %v651 = vunpack.c.l.s4 1934713408
        %v652 = vunpack.c.0.s8 %v651
        %v653 = vlaneseq
        %v654 = vshrl.u32 %v653, 7
        %v655 = vsub.s32 %v652, %v654
        %v656 = vrot.slane %v648, %v655
        %v658 = vunpack.c.l.s4 1934713408
        %v659 = vunpack.c.0.s8 %v658
        %v660 = vlaneseq
        %v661 = vshrl.u32 %v660, 7
        %v662 = vsub.s32 %v659, %v661
        %v663 = vrot.slane %v649, %v662
        %v664 = vcombine.low %v640, %v656
        %v665 = vcombine.high %v640, %v656
        %v666 = vcombine.low %v647, %v663
        %v667 = vcombine.high %v647, %v663
        %669 = vrot.lane.b32.xlu0 %v373, 96
        %v670 = vpop.permute.xlu0 %669
        %672 = vrot.lane.b32.xlu0 %v373, 64
        %v673 = vpop.permute.xlu0 %672
        %675 = vrot.lane.b32.xlu0 %v373, 32
        %v676 = vpop.permute.xlu0 %675
        %v678 = vcombine.low %v373, %v673
        %v679 = vcombine.high %v373, %v673
        %v681 = vunpack.c.l.s4 1983009808
        %v682 = vunpack.c.0.s8 %v681
        %v683 = vlaneseq
        %v684 = vshrl.u32 %v683, 7
        %v685 = vsub.s32 %v682, %v684
        %v686 = vrot.slane %v678, %v685
        %v688 = vunpack.c.l.s4 1983009808
        %v689 = vunpack.c.0.s8 %v688
        %v690 = vlaneseq
        %v691 = vshrl.u32 %v690, 7
        %v692 = vsub.s32 %v689, %v691
        %v693 = vrot.slane %v679, %v692
        %v694 = vcombine.low %v670, %v676
        %v695 = vcombine.high %v670, %v676
        %v697 = vunpack.c.l.s4 1983009808
        %v698 = vunpack.c.0.s8 %v697
        %v699 = vlaneseq
        %v700 = vshrl.u32 %v699, 7
        %v701 = vsub.s32 %v698, %v700
        %v702 = vrot.slane %v694, %v701
        %v704 = vunpack.c.l.s4 1983009808
        %v705 = vunpack.c.0.s8 %v704
        %v706 = vlaneseq
        %v707 = vshrl.u32 %v706, 7
        %v708 = vsub.s32 %v705, %v707
        %v709 = vrot.slane %v695, %v708
        %v710 = vcombine.low %v686, %v702
        %v711 = vcombine.high %v686, %v702
        %v713 = vunpack.c.l.s4 1934713408
        %v714 = vunpack.c.0.s8 %v713
        %v715 = vlaneseq
        %v716 = vshrl.u32 %v715, 7
        %v717 = vsub.s32 %v714, %v716
        %v718 = vrot.slane %v710, %v717
        %v720 = vunpack.c.l.s4 1934713408
        %v721 = vunpack.c.0.s8 %v720
        %v722 = vlaneseq
        %v723 = vshrl.u32 %v722, 7
        %v724 = vsub.s32 %v721, %v723
        %v725 = vrot.slane %v711, %v724
        %v726 = vcombine.low %v693, %v709
        %v727 = vcombine.high %v693, %v709
        %v729 = vunpack.c.l.s4 1934713408
        %v730 = vunpack.c.0.s8 %v729
        %v731 = vlaneseq
        %v732 = vshrl.u32 %v731, 7
        %v733 = vsub.s32 %v730, %v732
        %v734 = vrot.slane %v726, %v733
        %v736 = vunpack.c.l.s4 1934713408
        %v737 = vunpack.c.0.s8 %v736
        %v738 = vlaneseq
        %v739 = vshrl.u32 %v738, 7
        %v740 = vsub.s32 %v737, %v739
        %v741 = vrot.slane %v727, %v740
        %v742 = vcombine.high %v718, 0.0
        %v743 = vcombine.high %v725, 0.0
        %v744 = vcombine.high %v734, 0.0
        %v745 = vcombine.high %v741, 0.0
        %v746 = vcombine.low %v718, %v725
        %v748 = vunpack.c.l.s4 1983009808
        %v749 = vunpack.c.0.s8 %v748
        %v750 = vlaneseq
        %v751 = vshrl.u32 %v750, 7
        %v752 = vsub.s32 %v749, %v751
        %v753 = vrot.slane %v746, %v752
        %v754 = vcombine.low %v742, %v743
        %v756 = vunpack.c.l.s4 1983009808
        %v757 = vunpack.c.0.s8 %v756
        %v758 = vlaneseq
        %v759 = vshrl.u32 %v758, 7
        %v760 = vsub.s32 %v757, %v759
        %v761 = vrot.slane %v754, %v760
        %v762 = vcombine.low %v734, %v741
        %v764 = vunpack.c.l.s4 1983009808
        %v765 = vunpack.c.0.s8 %v764
        %v766 = vlaneseq
        %v767 = vshrl.u32 %v766, 7
        %v768 = vsub.s32 %v765, %v767
        %v769 = vrot.slane %v762, %v768
        %v770 = vcombine.low %v744, %v745
        %v772 = vunpack.c.l.s4 1983009808
        %v773 = vunpack.c.0.s8 %v772
        %v774 = vlaneseq
        %v775 = vshrl.u32 %v774, 7
        %v776 = vsub.s32 %v773, %v775
        %v777 = vrot.slane %v770, %v776
        %v778 = vcombine.low %v753, %v761
        %v779 = vcombine.high %v753, %v761
        %v781 = vunpack.c.l.s4 1934713408
        %v782 = vunpack.c.0.s8 %v781
        %v783 = vlaneseq
        %v784 = vshrl.u32 %v783, 7
        %v785 = vsub.s32 %v782, %v784
        %v786 = vrot.slane %v778, %v785
        %v788 = vunpack.c.l.s4 1934713408
        %v789 = vunpack.c.0.s8 %v788
        %v790 = vlaneseq
        %v791 = vshrl.u32 %v790, 7
        %v792 = vsub.s32 %v789, %v791
        %v793 = vrot.slane %v779, %v792
        %v794 = vcombine.low %v769, %v777
        %v795 = vcombine.high %v769, %v777
        %v797 = vunpack.c.l.s4 1934713408
        %v798 = vunpack.c.0.s8 %v797
        %v799 = vlaneseq
        %v800 = vshrl.u32 %v799, 7
        %v801 = vsub.s32 %v798, %v800
        %v802 = vrot.slane %v794, %v801
        %v804 = vunpack.c.l.s4 1934713408
        %v805 = vunpack.c.0.s8 %v804
        %v806 = vlaneseq
        %v807 = vshrl.u32 %v806, 7
        %v808 = vsub.s32 %v805, %v807
        %v809 = vrot.slane %v795, %v808
        %v810 = vcombine.low %v786, %v802
        %v811 = vcombine.high %v786, %v802
        %v812 = vcombine.low %v793, %v809
        %v813 = vcombine.high %v793, %v809
        %v815 = vsel %vm231, %v518, 0
        %v818 = vsel %vm231, %v664, 0
        %820 = vmatprep.subr.mxu0 0.0
        %821 = vmatpush1.xpose.msra.mxu0 0.0
        %822 = vmatprep.subr.mxu0 0.0
        %823 = vmatpush1.xpose.msra.mxu0 0.0
        %824 = vmatprep.subr.mxu0 0.0
        %825 = vmatpush1.xpose.msra.mxu0 0.0
        %826 = vmatprep.subr.mxu0 0.0
        %827 = vmatpush1.xpose.msra.mxu0 0.0
        %828 = vmatprep.subr.mxu0 0.0
        %829 = vmatpush1.xpose.msra.mxu0 0.0
        %830 = vmatprep.subr.mxu0 0.0
        %831 = vmatpush1.xpose.msra.mxu0 0.0
        %832 = vmatprep.subr.mxu0 0.0
        %833 = vmatpush1.xpose.msra.mxu0 0.0
        %834 = vmatprep.subr.mxu0 0.0
        %835 = vmatpush1.xpose.msra.mxu0 0.0
        %836 = vmatprep.subr.mxu0 0.0
        %837 = vmatpush1.xpose.msra.mxu0 0.0
        %838 = vmatprep.subr.mxu0 0.0
        %839 = vmatpush1.xpose.msra.mxu0 0.0
        %840 = vmatprep.subr.mxu0 0.0
        %841 = vmatpush1.xpose.msra.mxu0 0.0
        %842 = vmatprep.subr.mxu0 0.0
        %843 = vmatpush1.xpose.msra.mxu0 0.0
        %844 = vmatprep.subr.mxu0 0.0
        %845 = vmatpush1.xpose.msra.mxu0 0.0
        %846 = vmatprep.subr.mxu0 0.0
        %847 = vmatpush1.xpose.msra.mxu0 0.0
        %848 = vmatprep.subr.mxu0 0.0
        %849 = vmatpush1.xpose.msra.mxu0 0.0
        %850 = vmatprep.subr.mxu0 0.0
        %851 = vmatpush1.xpose.msra.mxu0 %v818
        %852 = vmatprep.subr.mxu0 0.0
        %853 = vmatpush2.xpose.msra.mxu0 0.0
        %854 = vmatprep.subr.mxu0 0.0
        %855 = vmatpush2.xpose.msra.mxu0 0.0
        %856 = vmatprep.subr.mxu0 0.0
        %857 = vmatpush2.xpose.msra.mxu0 0.0
        %858 = vmatprep.subr.mxu0 0.0
        %859 = vmatpush2.xpose.msra.mxu0 0.0
        %860 = vmatprep.subr.mxu0 0.0
        %861 = vmatpush2.xpose.msra.mxu0 0.0
        %862 = vmatprep.subr.mxu0 0.0
        %863 = vmatpush2.xpose.msra.mxu0 0.0
        %864 = vmatprep.subr.mxu0 0.0
        %865 = vmatpush2.xpose.msra.mxu0 0.0
        %866 = vmatprep.subr.mxu0 0.0
        %867 = vmatpush2.xpose.msra.mxu0 0.0
        %868 = vmatprep.subr.mxu0 0.0
        %869 = vmatpush2.xpose.msra.mxu0 0.0
        %870 = vmatprep.subr.mxu0 0.0
        %871 = vmatpush2.xpose.msra.mxu0 0.0
        %872 = vmatprep.subr.mxu0 0.0
        %873 = vmatpush2.xpose.msra.mxu0 0.0
        %874 = vmatprep.subr.mxu0 0.0
        %875 = vmatpush2.xpose.msra.mxu0 0.0
        %876 = vmatprep.subr.mxu0 0.0
        %877 = vmatpush2.xpose.msra.mxu0 0.0
        %878 = vmatprep.subr.mxu0 0.0
        %879 = vmatpush2.xpose.msra.mxu0 0.0
        %880 = vmatprep.subr.mxu0 0.0
        %881 = vmatpush2.xpose.msra.mxu0 0.0
        %882 = vmatprep.subr.mxu0 0.0
        %883 = vmatpush2.xpose.msra.mxu0 0.0
        %884 = vmatprep.mubr.f32.mxu0 0.0
        %885 = vmatmul.mubr.f32.gmra.mxu0 %v815
        %v886 = vpop.f32.mrf.mxu0
        %v887 = vadd.f32 0.0, %v886
        %v888 = vpop.f32.mrf.mxu0
        %889 = vdwg.mxu0
        %v891 = vsel %vm231, %v519, 0
        %v894 = vsel %vm231, %v665, 0
        %896 = vmatprep.subr.mxu0 0.0
        %897 = vmatpush1.xpose.msra.mxu0 0.0
        %898 = vmatprep.subr.mxu0 0.0
        %899 = vmatpush1.xpose.msra.mxu0 0.0
        %900 = vmatprep.subr.mxu0 0.0
        %901 = vmatpush1.xpose.msra.mxu0 0.0
        %902 = vmatprep.subr.mxu0 0.0
        %903 = vmatpush1.xpose.msra.mxu0 0.0
        %904 = vmatprep.subr.mxu0 0.0
        %905 = vmatpush1.xpose.msra.mxu0 0.0
        %906 = vmatprep.subr.mxu0 0.0
        %907 = vmatpush1.xpose.msra.mxu0 0.0
        %908 = vmatprep.subr.mxu0 0.0
        %909 = vmatpush1.xpose.msra.mxu0 0.0
        %910 = vmatprep.subr.mxu0 0.0
        %911 = vmatpush1.xpose.msra.mxu0 0.0
        %912 = vmatprep.subr.mxu0 0.0
        %913 = vmatpush1.xpose.msra.mxu0 0.0
        %914 = vmatprep.subr.mxu0 0.0
        %915 = vmatpush1.xpose.msra.mxu0 0.0
        %916 = vmatprep.subr.mxu0 0.0
        %917 = vmatpush1.xpose.msra.mxu0 0.0
        %918 = vmatprep.subr.mxu0 0.0
        %919 = vmatpush1.xpose.msra.mxu0 0.0
        %920 = vmatprep.subr.mxu0 0.0
        %921 = vmatpush1.xpose.msra.mxu0 0.0
        %922 = vmatprep.subr.mxu0 0.0
        %923 = vmatpush1.xpose.msra.mxu0 0.0
        %924 = vmatprep.subr.mxu0 0.0
        %925 = vmatpush1.xpose.msra.mxu0 0.0
        %926 = vmatprep.subr.mxu0 0.0
        %927 = vmatpush1.xpose.msra.mxu0 %v894
        %928 = vmatprep.subr.mxu0 0.0
        %929 = vmatpush2.xpose.msra.mxu0 0.0
        %930 = vmatprep.subr.mxu0 0.0
        %931 = vmatpush2.xpose.msra.mxu0 0.0
        %932 = vmatprep.subr.mxu0 0.0
        %933 = vmatpush2.xpose.msra.mxu0 0.0
        %934 = vmatprep.subr.mxu0 0.0
        %935 = vmatpush2.xpose.msra.mxu0 0.0
        %936 = vmatprep.subr.mxu0 0.0
        %937 = vmatpush2.xpose.msra.mxu0 0.0
        %938 = vmatprep.subr.mxu0 0.0
        %939 = vmatpush2.xpose.msra.mxu0 0.0
        %940 = vmatprep.subr.mxu0 0.0
        %941 = vmatpush2.xpose.msra.mxu0 0.0
        %942 = vmatprep.subr.mxu0 0.0
        %943 = vmatpush2.xpose.msra.mxu0 0.0
        %944 = vmatprep.subr.mxu0 0.0
        %945 = vmatpush2.xpose.msra.mxu0 0.0
        %946 = vmatprep.subr.mxu0 0.0
        %947 = vmatpush2.xpose.msra.mxu0 0.0
        %948 = vmatprep.subr.mxu0 0.0
        %949 = vmatpush2.xpose.msra.mxu0 0.0
        %950 = vmatprep.subr.mxu0 0.0
        %951 = vmatpush2.xpose.msra.mxu0 0.0
        %952 = vmatprep.subr.mxu0 0.0
        %953 = vmatpush2.xpose.msra.mxu0 0.0
        %954 = vmatprep.subr.mxu0 0.0
        %955 = vmatpush2.xpose.msra.mxu0 0.0
        %956 = vmatprep.subr.mxu0 0.0
        %957 = vmatpush2.xpose.msra.mxu0 0.0
        %958 = vmatprep.subr.mxu0 0.0
        %959 = vmatpush2.xpose.msra.mxu0 0.0
        %960 = vmatprep.mubr.f32.mxu0 0.0
        %961 = vmatmul.mubr.f32.gmra.mxu0 %v891
        %v962 = vpop.f32.mrf.mxu0
        %v963 = vadd.f32 0.0, %v962
        %v964 = vpop.f32.mrf.mxu0
        %965 = vdwg.mxu0
        %v967 = vsel %vm231, %v520, 0
        %v970 = vsel %vm231, %v666, 0
        %972 = vmatprep.subr.mxu0 0.0
        %973 = vmatpush1.xpose.msra.mxu0 0.0
        %974 = vmatprep.subr.mxu0 0.0
        %975 = vmatpush1.xpose.msra.mxu0 0.0
        %976 = vmatprep.subr.mxu0 0.0
        %977 = vmatpush1.xpose.msra.mxu0 0.0
        %978 = vmatprep.subr.mxu0 0.0
        %979 = vmatpush1.xpose.msra.mxu0 0.0
        %980 = vmatprep.subr.mxu0 0.0
        %981 = vmatpush1.xpose.msra.mxu0 0.0
        %982 = vmatprep.subr.mxu0 0.0
        %983 = vmatpush1.xpose.msra.mxu0 0.0
        %984 = vmatprep.subr.mxu0 0.0
        %985 = vmatpush1.xpose.msra.mxu0 0.0
        %986 = vmatprep.subr.mxu0 0.0
        %987 = vmatpush1.xpose.msra.mxu0 0.0
        %988 = vmatprep.subr.mxu0 0.0
        %989 = vmatpush1.xpose.msra.mxu0 0.0
        %990 = vmatprep.subr.mxu0 0.0
        %991 = vmatpush1.xpose.msra.mxu0 0.0
        %992 = vmatprep.subr.mxu0 0.0
        %993 = vmatpush1.xpose.msra.mxu0 0.0
        %994 = vmatprep.subr.mxu0 0.0
        %995 = vmatpush1.xpose.msra.mxu0 0.0
        %996 = vmatprep.subr.mxu0 0.0
        %997 = vmatpush1.xpose.msra.mxu0 0.0
        %998 = vmatprep.subr.mxu0 0.0
        %999 = vmatpush1.xpose.msra.mxu0 0.0
        %1000 = vmatprep.subr.mxu0 0.0
        %1001 = vmatpush1.xpose.msra.mxu0 0.0
        %1002 = vmatprep.subr.mxu0 0.0
        %1003 = vmatpush1.xpose.msra.mxu0 %v970
        %1004 = vmatprep.subr.mxu0 0.0
        %1005 = vmatpush2.xpose.msra.mxu0 0.0
        %1006 = vmatprep.subr.mxu0 0.0
        %1007 = vmatpush2.xpose.msra.mxu0 0.0
        %1008 = vmatprep.subr.mxu0 0.0
        %1009 = vmatpush2.xpose.msra.mxu0 0.0
        %1010 = vmatprep.subr.mxu0 0.0
        %1011 = vmatpush2.xpose.msra.mxu0 0.0
        %1012 = vmatprep.subr.mxu0 0.0
        %1013 = vmatpush2.xpose.msra.mxu0 0.0
        %1014 = vmatprep.subr.mxu0 0.0
        %1015 = vmatpush2.xpose.msra.mxu0 0.0
        %1016 = vmatprep.subr.mxu0 0.0
        %1017 = vmatpush2.xpose.msra.mxu0 0.0
        %1018 = vmatprep.subr.mxu0 0.0
        %1019 = vmatpush2.xpose.msra.mxu0 0.0
        %1020 = vmatprep.subr.mxu0 0.0
        %1021 = vmatpush2.xpose.msra.mxu0 0.0
        %1022 = vmatprep.subr.mxu0 0.0
        %1023 = vmatpush2.xpose.msra.mxu0 0.0
        %1024 = vmatprep.subr.mxu0 0.0
        %1025 = vmatpush2.xpose.msra.mxu0 0.0
        %1026 = vmatprep.subr.mxu0 0.0
        %1027 = vmatpush2.xpose.msra.mxu0 0.0
        %1028 = vmatprep.subr.mxu0 0.0
        %1029 = vmatpush2.xpose.msra.mxu0 0.0
        %1030 = vmatprep.subr.mxu0 0.0
        %1031 = vmatpush2.xpose.msra.mxu0 0.0
        %1032 = vmatprep.subr.mxu0 0.0
        %1033 = vmatpush2.xpose.msra.mxu0 0.0
        %1034 = vmatprep.subr.mxu0 0.0
        %1035 = vmatpush2.xpose.msra.mxu0 0.0
        %1036 = vmatprep.mubr.f32.mxu0 0.0
        %1037 = vmatmul.mubr.f32.gmra.mxu0 %v967
        %v1038 = vpop.f32.mrf.mxu0
        %v1039 = vadd.f32 0.0, %v1038
        %v1040 = vpop.f32.mrf.mxu0
        %1041 = vdwg.mxu0
        %v1043 = vsel %vm231, %v521, 0
        %v1046 = vsel %vm231, %v667, 0
        %1048 = vmatprep.subr.mxu0 0.0
        %1049 = vmatpush1.xpose.msra.mxu0 0.0
        %1050 = vmatprep.subr.mxu0 0.0
        %1051 = vmatpush1.xpose.msra.mxu0 0.0
        %1052 = vmatprep.subr.mxu0 0.0
        %1053 = vmatpush1.xpose.msra.mxu0 0.0
        %1054 = vmatprep.subr.mxu0 0.0
        %1055 = vmatpush1.xpose.msra.mxu0 0.0
        %1056 = vmatprep.subr.mxu0 0.0
        %1057 = vmatpush1.xpose.msra.mxu0 0.0
        %1058 = vmatprep.subr.mxu0 0.0
        %1059 = vmatpush1.xpose.msra.mxu0 0.0
        %1060 = vmatprep.subr.mxu0 0.0
        %1061 = vmatpush1.xpose.msra.mxu0 0.0
        %1062 = vmatprep.subr.mxu0 0.0
        %1063 = vmatpush1.xpose.msra.mxu0 0.0
        %1064 = vmatprep.subr.mxu0 0.0
        %1065 = vmatpush1.xpose.msra.mxu0 0.0
        %1066 = vmatprep.subr.mxu0 0.0
        %1067 = vmatpush1.xpose.msra.mxu0 0.0
        %1068 = vmatprep.subr.mxu0 0.0
        %1069 = vmatpush1.xpose.msra.mxu0 0.0
        %1070 = vmatprep.subr.mxu0 0.0
        %1071 = vmatpush1.xpose.msra.mxu0 0.0
        %1072 = vmatprep.subr.mxu0 0.0
        %1073 = vmatpush1.xpose.msra.mxu0 0.0
        %1074 = vmatprep.subr.mxu0 0.0
        %1075 = vmatpush1.xpose.msra.mxu0 0.0
        %1076 = vmatprep.subr.mxu0 0.0
        %1077 = vmatpush1.xpose.msra.mxu0 0.0
        %1078 = vmatprep.subr.mxu0 0.0
        %1079 = vmatpush1.xpose.msra.mxu0 %v1046
        %1080 = vmatprep.subr.mxu0 0.0
        %1081 = vmatpush2.xpose.msra.mxu0 0.0
        %1082 = vmatprep.subr.mxu0 0.0
        %1083 = vmatpush2.xpose.msra.mxu0 0.0
        %1084 = vmatprep.subr.mxu0 0.0
        %1085 = vmatpush2.xpose.msra.mxu0 0.0
        %1086 = vmatprep.subr.mxu0 0.0
        %1087 = vmatpush2.xpose.msra.mxu0 0.0
        %1088 = vmatprep.subr.mxu0 0.0
        %1089 = vmatpush2.xpose.msra.mxu0 0.0
        %1090 = vmatprep.subr.mxu0 0.0
        %1091 = vmatpush2.xpose.msra.mxu0 0.0
        %1092 = vmatprep.subr.mxu0 0.0
        %1093 = vmatpush2.xpose.msra.mxu0 0.0
        %1094 = vmatprep.subr.mxu0 0.0
        %1095 = vmatpush2.xpose.msra.mxu0 0.0
        %1096 = vmatprep.subr.mxu0 0.0
        %1097 = vmatpush2.xpose.msra.mxu0 0.0
        %1098 = vmatprep.subr.mxu0 0.0
        %1099 = vmatpush2.xpose.msra.mxu0 0.0
        %1100 = vmatprep.subr.mxu0 0.0
        %1101 = vmatpush2.xpose.msra.mxu0 0.0
        %1102 = vmatprep.subr.mxu0 0.0
        %1103 = vmatpush2.xpose.msra.mxu0 0.0
        %1104 = vmatprep.subr.mxu0 0.0
        %1105 = vmatpush2.xpose.msra.mxu0 0.0
        %1106 = vmatprep.subr.mxu0 0.0
        %1107 = vmatpush2.xpose.msra.mxu0 0.0
        %1108 = vmatprep.subr.mxu0 0.0
        %1109 = vmatpush2.xpose.msra.mxu0 0.0
        %1110 = vmatprep.subr.mxu0 0.0
        %1111 = vmatpush2.xpose.msra.mxu0 0.0
        %1112 = vmatprep.mubr.f32.mxu0 0.0
        %1113 = vmatmul.mubr.f32.gmra.mxu0 %v1043
        %v1114 = vpop.f32.mrf.mxu0
        %v1115 = vadd.f32 0.0, %v1114
        %v1116 = vpop.f32.mrf.mxu0
        %1117 = vdwg.mxu0
        %v1118 = vmul.f32 %v887, 0.17677669
        %v1119 = vmul.f32 %v963, 0.17677669
        %v1120 = vmul.f32 %v1039, 0.17677669
        %v1121 = vmul.f32 %v1115, 0.17677669
        %vm1122 = vcmask 64512
        %v1123 = vsel %vm1122, %v1118, -inf
        %1124 = vmax.xlane.f32.xlu0 %v1123
        %v1125 = vpop.xlane.xlu0 %1124
        %v1126 = vsel %vm1122, %v1119, -inf
        %1127 = vmax.xlane.f32.xlu0 %v1126
        %v1128 = vpop.xlane.xlu0 %1127
        %v1129 = vsel %vm1122, %v1120, -inf
        %1130 = vmax.xlane.f32.xlu0 %v1129
        %v1131 = vpop.xlane.xlu0 %1130
        %v1132 = vsel %vm1122, %v1121, -inf
        %1133 = vmax.xlane.f32.xlu0 %v1132
        %v1134 = vpop.xlane.xlu0 %1133
        %v1135 = vsub.f32 %v1118, %v1125
        %v1136 = vsub.f32 %v1119, %v1128
        %v1137 = vsub.f32 %v1120, %v1131
        %v1138 = vsub.f32 %v1121, %v1134
        %v1139 = vmul.f32 %v1135, 1.442695
        %v1140 = vpow.pop %v1139
        %v1141 = vmul.f32 %v1136, 1.442695
        %v1142 = vpow.pop %v1141
        %v1143 = vmul.f32 %v1137, 1.442695
        %v1144 = vpow.pop %v1143
        %v1145 = vmul.f32 %v1138, 1.442695
        %v1146 = vpow.pop %v1145
        %v1147 = vsel %vm1122, %v1140, 0.0
        %1148 = vadd.xlane.f32.xlu0 %v1147
        %v1149 = vpop.xlane.xlu0 %1148
        %v1150 = vsel %vm1122, %v1142, 0.0
        %1151 = vadd.xlane.f32.xlu0 %v1150
        %v1152 = vpop.xlane.xlu0 %1151
        %v1153 = vsel %vm1122, %v1144, 0.0
        %1154 = vadd.xlane.f32.xlu0 %v1153
        %v1155 = vpop.xlane.xlu0 %1154
        %v1156 = vsel %vm1122, %v1146, 0.0
        %1157 = vadd.xlane.f32.xlu0 %v1156
        %v1158 = vpop.xlane.xlu0 %1157
        %v1160 = vsel %vm1122, %v1140, 0
        %1162 = vmatprep.subr.mxu0 0.0
        %1163 = vmatpush1.msra.mxu0 0.0
        %1164 = vmatprep.subr.mxu0 0.0
        %1165 = vmatpush1.msra.mxu0 0.0
        %1166 = vmatprep.subr.mxu0 0.0
        %1167 = vmatpush1.msra.mxu0 0.0
        %1168 = vmatprep.subr.mxu0 0.0
        %1169 = vmatpush1.msra.mxu0 0.0
        %1170 = vmatprep.subr.mxu0 0.0
        %1171 = vmatpush1.msra.mxu0 0.0
        %1172 = vmatprep.subr.mxu0 0.0
        %1173 = vmatpush1.msra.mxu0 0.0
        %1174 = vmatprep.subr.mxu0 0.0
        %1175 = vmatpush1.msra.mxu0 0.0
        %1176 = vmatprep.subr.mxu0 0.0
        %1177 = vmatpush1.msra.mxu0 0.0
        %1178 = vmatprep.subr.mxu0 0.0
        %1179 = vmatpush1.msra.mxu0 0.0
        %1180 = vmatprep.subr.mxu0 0.0
        %1181 = vmatpush1.msra.mxu0 0.0
        %1182 = vmatprep.subr.mxu0 0.0
        %1183 = vmatpush1.msra.mxu0 0.0
        %1184 = vmatprep.subr.mxu0 0.0
        %1185 = vmatpush1.msra.mxu0 0.0
        %1186 = vmatprep.subr.mxu0 0.0
        %1187 = vmatpush1.msra.mxu0 0.0
        %1188 = vmatprep.subr.mxu0 0.0
        %1189 = vmatpush1.msra.mxu0 0.0
        %1190 = vmatprep.subr.mxu0 0.0
        %1191 = vmatpush1.msra.mxu0 0.0
        %1192 = vmatprep.subr.mxu0 0.0
        %1193 = vmatpush1.msra.mxu0 %v810
        %1194 = vmatprep.subr.mxu0 0.0
        %1195 = vmatpush2.msra.mxu0 0.0
        %1196 = vmatprep.subr.mxu0 0.0
        %1197 = vmatpush2.msra.mxu0 0.0
        %1198 = vmatprep.subr.mxu0 0.0
        %1199 = vmatpush2.msra.mxu0 0.0
        %1200 = vmatprep.subr.mxu0 0.0
        %1201 = vmatpush2.msra.mxu0 0.0
        %1202 = vmatprep.subr.mxu0 0.0
        %1203 = vmatpush2.msra.mxu0 0.0
        %1204 = vmatprep.subr.mxu0 0.0
        %1205 = vmatpush2.msra.mxu0 0.0
        %1206 = vmatprep.subr.mxu0 0.0
        %1207 = vmatpush2.msra.mxu0 0.0
        %1208 = vmatprep.subr.mxu0 0.0
        %1209 = vmatpush2.msra.mxu0 0.0
        %1210 = vmatprep.subr.mxu0 0.0
        %1211 = vmatpush2.msra.mxu0 0.0
        %1212 = vmatprep.subr.mxu0 0.0
        %1213 = vmatpush2.msra.mxu0 0.0
        %1214 = vmatprep.subr.mxu0 0.0
        %1215 = vmatpush2.msra.mxu0 0.0
        %1216 = vmatprep.subr.mxu0 0.0
        %1217 = vmatpush2.msra.mxu0 0.0
        %1218 = vmatprep.subr.mxu0 0.0
        %1219 = vmatpush2.msra.mxu0 0.0
        %1220 = vmatprep.subr.mxu0 0.0
        %1221 = vmatpush2.msra.mxu0 0.0
        %1222 = vmatprep.subr.mxu0 0.0
        %1223 = vmatpush2.msra.mxu0 0.0
        %1224 = vmatprep.subr.mxu0 0.0
        %1225 = vmatpush2.msra.mxu0 0.0
        %1226 = vmatprep.mubr.f32.mxu0 0.0
        %1227 = vmatmul.mubr.f32.gmra.mxu0 %v1160
        %v1228 = vpop.f32.mrf.mxu0
        %v1229 = vadd.f32 0.0, %v1228
        %v1230 = vpop.f32.mrf.mxu0
        %1231 = vdwg.mxu0
        %v1233 = vsel %vm1122, %v1142, 0
        %1235 = vmatprep.subr.mxu0 0.0
        %1236 = vmatpush1.msra.mxu0 0.0
        %1237 = vmatprep.subr.mxu0 0.0
        %1238 = vmatpush1.msra.mxu0 0.0
        %1239 = vmatprep.subr.mxu0 0.0
        %1240 = vmatpush1.msra.mxu0 0.0
        %1241 = vmatprep.subr.mxu0 0.0
        %1242 = vmatpush1.msra.mxu0 0.0
        %1243 = vmatprep.subr.mxu0 0.0
        %1244 = vmatpush1.msra.mxu0 0.0
        %1245 = vmatprep.subr.mxu0 0.0
        %1246 = vmatpush1.msra.mxu0 0.0
        %1247 = vmatprep.subr.mxu0 0.0
        %1248 = vmatpush1.msra.mxu0 0.0
        %1249 = vmatprep.subr.mxu0 0.0
        %1250 = vmatpush1.msra.mxu0 0.0
        %1251 = vmatprep.subr.mxu0 0.0
        %1252 = vmatpush1.msra.mxu0 0.0
        %1253 = vmatprep.subr.mxu0 0.0
        %1254 = vmatpush1.msra.mxu0 0.0
        %1255 = vmatprep.subr.mxu0 0.0
        %1256 = vmatpush1.msra.mxu0 0.0
        %1257 = vmatprep.subr.mxu0 0.0
        %1258 = vmatpush1.msra.mxu0 0.0
        %1259 = vmatprep.subr.mxu0 0.0
        %1260 = vmatpush1.msra.mxu0 0.0
        %1261 = vmatprep.subr.mxu0 0.0
        %1262 = vmatpush1.msra.mxu0 0.0
        %1263 = vmatprep.subr.mxu0 0.0
        %1264 = vmatpush1.msra.mxu0 0.0
        %1265 = vmatprep.subr.mxu0 0.0
        %1266 = vmatpush1.msra.mxu0 %v811
        %1267 = vmatprep.subr.mxu0 0.0
        %1268 = vmatpush2.msra.mxu0 0.0
        %1269 = vmatprep.subr.mxu0 0.0
        %1270 = vmatpush2.msra.mxu0 0.0
        %1271 = vmatprep.subr.mxu0 0.0
        %1272 = vmatpush2.msra.mxu0 0.0
        %1273 = vmatprep.subr.mxu0 0.0
        %1274 = vmatpush2.msra.mxu0 0.0
        %1275 = vmatprep.subr.mxu0 0.0
        %1276 = vmatpush2.msra.mxu0 0.0
        %1277 = vmatprep.subr.mxu0 0.0
        %1278 = vmatpush2.msra.mxu0 0.0
        %1279 = vmatprep.subr.mxu0 0.0
        %1280 = vmatpush2.msra.mxu0 0.0
        %1281 = vmatprep.subr.mxu0 0.0
        %1282 = vmatpush2.msra.mxu0 0.0
        %1283 = vmatprep.subr.mxu0 0.0
        %1284 = vmatpush2.msra.mxu0 0.0
        %1285 = vmatprep.subr.mxu0 0.0
        %1286 = vmatpush2.msra.mxu0 0.0
        %1287 = vmatprep.subr.mxu0 0.0
        %1288 = vmatpush2.msra.mxu0 0.0
        %1289 = vmatprep.subr.mxu0 0.0
        %1290 = vmatpush2.msra.mxu0 0.0
        %1291 = vmatprep.subr.mxu0 0.0
        %1292 = vmatpush2.msra.mxu0 0.0
        %1293 = vmatprep.subr.mxu0 0.0
        %1294 = vmatpush2.msra.mxu0 0.0
        %1295 = vmatprep.subr.mxu0 0.0
        %1296 = vmatpush2.msra.mxu0 0.0
        %1297 = vmatprep.subr.mxu0 0.0
        %1298 = vmatpush2.msra.mxu0 0.0
        %1299 = vmatprep.mubr.f32.mxu0 0.0
        %1300 = vmatmul.mubr.f32.gmra.mxu0 %v1233
        %v1301 = vpop.f32.mrf.mxu0
        %v1302 = vadd.f32 0.0, %v1301
        %v1303 = vpop.f32.mrf.mxu0
        %1304 = vdwg.mxu0
        %v1306 = vsel %vm1122, %v1144, 0
        %1308 = vmatprep.subr.mxu0 0.0
        %1309 = vmatpush1.msra.mxu0 0.0
        %1310 = vmatprep.subr.mxu0 0.0
        %1311 = vmatpush1.msra.mxu0 0.0
        %1312 = vmatprep.subr.mxu0 0.0
        %1313 = vmatpush1.msra.mxu0 0.0
        %1314 = vmatprep.subr.mxu0 0.0
        %1315 = vmatpush1.msra.mxu0 0.0
        %1316 = vmatprep.subr.mxu0 0.0
        %1317 = vmatpush1.msra.mxu0 0.0
        %1318 = vmatprep.subr.mxu0 0.0
        %1319 = vmatpush1.msra.mxu0 0.0
        %1320 = vmatprep.subr.mxu0 0.0
        %1321 = vmatpush1.msra.mxu0 0.0
        %1322 = vmatprep.subr.mxu0 0.0
        %1323 = vmatpush1.msra.mxu0 0.0
        %1324 = vmatprep.subr.mxu0 0.0
        %1325 = vmatpush1.msra.mxu0 0.0
        %1326 = vmatprep.subr.mxu0 0.0
        %1327 = vmatpush1.msra.mxu0 0.0
        %1328 = vmatprep.subr.mxu0 0.0
        %1329 = vmatpush1.msra.mxu0 0.0
        %1330 = vmatprep.subr.mxu0 0.0
        %1331 = vmatpush1.msra.mxu0 0.0
        %1332 = vmatprep.subr.mxu0 0.0
        %1333 = vmatpush1.msra.mxu0 0.0
        %1334 = vmatprep.subr.mxu0 0.0
        %1335 = vmatpush1.msra.mxu0 0.0
        %1336 = vmatprep.subr.mxu0 0.0
        %1337 = vmatpush1.msra.mxu0 0.0
        %1338 = vmatprep.subr.mxu0 0.0
        %1339 = vmatpush1.msra.mxu0 %v812
        %1340 = vmatprep.subr.mxu0 0.0
        %1341 = vmatpush2.msra.mxu0 0.0
        %1342 = vmatprep.subr.mxu0 0.0
        %1343 = vmatpush2.msra.mxu0 0.0
        %1344 = vmatprep.subr.mxu0 0.0
        %1345 = vmatpush2.msra.mxu0 0.0
        %1346 = vmatprep.subr.mxu0 0.0
        %1347 = vmatpush2.msra.mxu0 0.0
        %1348 = vmatprep.subr.mxu0 0.0
        %1349 = vmatpush2.msra.mxu0 0.0
        %1350 = vmatprep.subr.mxu0 0.0
        %1351 = vmatpush2.msra.mxu0 0.0
        %1352 = vmatprep.subr.mxu0 0.0
        %1353 = vmatpush2.msra.mxu0 0.0
        %1354 = vmatprep.subr.mxu0 0.0
        %1355 = vmatpush2.msra.mxu0 0.0
        %1356 = vmatprep.subr.mxu0 0.0
        %1357 = vmatpush2.msra.mxu0 0.0
        %1358 = vmatprep.subr.mxu0 0.0
        %1359 = vmatpush2.msra.mxu0 0.0
        %1360 = vmatprep.subr.mxu0 0.0
        %1361 = vmatpush2.msra.mxu0 0.0
        %1362 = vmatprep.subr.mxu0 0.0
        %1363 = vmatpush2.msra.mxu0 0.0
        %1364 = vmatprep.subr.mxu0 0.0
        %1365 = vmatpush2.msra.mxu0 0.0
        %1366 = vmatprep.subr.mxu0 0.0
        %1367 = vmatpush2.msra.mxu0 0.0
        %1368 = vmatprep.subr.mxu0 0.0
        %1369 = vmatpush2.msra.mxu0 0.0
        %1370 = vmatprep.subr.mxu0 0.0
        %1371 = vmatpush2.msra.mxu0 0.0
        %1372 = vmatprep.mubr.f32.mxu0 0.0
        %1373 = vmatmul.mubr.f32.gmra.mxu0 %v1306
        %v1374 = vpop.f32.mrf.mxu0
        %v1375 = vadd.f32 0.0, %v1374
        %v1376 = vpop.f32.mrf.mxu0
        %1377 = vdwg.mxu0
        %v1379 = vsel %vm1122, %v1146, 0
        %1381 = vmatprep.subr.mxu0 0.0
        %1382 = vmatpush1.msra.mxu0 0.0
        %1383 = vmatprep.subr.mxu0 0.0
        %1384 = vmatpush1.msra.mxu0 0.0
        %1385 = vmatprep.subr.mxu0 0.0
        %1386 = vmatpush1.msra.mxu0 0.0
        %1387 = vmatprep.subr.mxu0 0.0
        %1388 = vmatpush1.msra.mxu0 0.0
        %1389 = vmatprep.subr.mxu0 0.0
        %1390 = vmatpush1.msra.mxu0 0.0
        %1391 = vmatprep.subr.mxu0 0.0
        %1392 = vmatpush1.msra.mxu0 0.0
        %1393 = vmatprep.subr.mxu0 0.0
        %1394 = vmatpush1.msra.mxu0 0.0
        %1395 = vmatprep.subr.mxu0 0.0
        %1396 = vmatpush1.msra.mxu0 0.0
        %1397 = vmatprep.subr.mxu0 0.0
        %1398 = vmatpush1.msra.mxu0 0.0
        %1399 = vmatprep.subr.mxu0 0.0
        %1400 = vmatpush1.msra.mxu0 0.0
        %1401 = vmatprep.subr.mxu0 0.0
        %1402 = vmatpush1.msra.mxu0 0.0
        %1403 = vmatprep.subr.mxu0 0.0
        %1404 = vmatpush1.msra.mxu0 0.0
        %1405 = vmatprep.subr.mxu0 0.0
        %1406 = vmatpush1.msra.mxu0 0.0
        %1407 = vmatprep.subr.mxu0 0.0
        %1408 = vmatpush1.msra.mxu0 0.0
        %1409 = vmatprep.subr.mxu0 0.0
        %1410 = vmatpush1.msra.mxu0 0.0
        %1411 = vmatprep.subr.mxu0 0.0
        %1412 = vmatpush1.msra.mxu0 %v813
        %1413 = vmatprep.subr.mxu0 0.0
        %1414 = vmatpush2.msra.mxu0 0.0
        %1415 = vmatprep.subr.mxu0 0.0
        %1416 = vmatpush2.msra.mxu0 0.0
        %1417 = vmatprep.subr.mxu0 0.0
        %1418 = vmatpush2.msra.mxu0 0.0
        %1419 = vmatprep.subr.mxu0 0.0
        %1420 = vmatpush2.msra.mxu0 0.0
        %1421 = vmatprep.subr.mxu0 0.0
        %1422 = vmatpush2.msra.mxu0 0.0
        %1423 = vmatprep.subr.mxu0 0.0
        %1424 = vmatpush2.msra.mxu0 0.0
        %1425 = vmatprep.subr.mxu0 0.0
        %1426 = vmatpush2.msra.mxu0 0.0
        %1427 = vmatprep.subr.mxu0 0.0
        %1428 = vmatpush2.msra.mxu0 0.0
        %1429 = vmatprep.subr.mxu0 0.0
        %1430 = vmatpush2.msra.mxu0 0.0
        %1431 = vmatprep.subr.mxu0 0.0
        %1432 = vmatpush2.msra.mxu0 0.0
        %1433 = vmatprep.subr.mxu0 0.0
        %1434 = vmatpush2.msra.mxu0 0.0
        %1435 = vmatprep.subr.mxu0 0.0
        %1436 = vmatpush2.msra.mxu0 0.0
        %1437 = vmatprep.subr.mxu0 0.0
        %1438 = vmatpush2.msra.mxu0 0.0
        %1439 = vmatprep.subr.mxu0 0.0
        %1440 = vmatpush2.msra.mxu0 0.0
        %1441 = vmatprep.subr.mxu0 0.0
        %1442 = vmatpush2.msra.mxu0 0.0
        %1443 = vmatprep.subr.mxu0 0.0
        %1444 = vmatpush2.msra.mxu0 0.0
        %1445 = vmatprep.mubr.f32.mxu0 0.0
        %1446 = vmatmul.mubr.f32.gmra.mxu0 %v1379
        %v1447 = vpop.f32.mrf.mxu0
        %v1448 = vadd.f32 0.0, %v1447
        %v1449 = vpop.f32.mrf.mxu0
        %1450 = vdwg.mxu0
        %v1451 = vrcp.pop %v1149
        %v1452 = vrcp.pop %v1152
        %v1453 = vrcp.pop %v1155
        %v1454 = vrcp.pop %v1158
        %v1455 = vmul.f32 %v1149, %v1451
        %v1456 = vmul.f32 %v1152, %v1452
        %v1457 = vmul.f32 %v1155, %v1453
        %v1458 = vmul.f32 %v1158, %v1454
        %v1459 = vsub.f32 2.0, %v1455
        %v1460 = vsub.f32 2.0, %v1456
        %v1461 = vsub.f32 2.0, %v1457
        %v1462 = vsub.f32 2.0, %v1458
        %v1463 = vmul.f32 %v1451, %v1459
        %v1464 = vmul.f32 %v1452, %v1460
        %v1465 = vmul.f32 %v1453, %v1461
        %v1466 = vmul.f32 %v1454, %v1462
        %v1467 = vmul.f32 %v1229, %v1463
        %v1468 = vmul.f32 %v1302, %v1464
        %v1469 = vmul.f32 %v1375, %v1465
        %v1470 = vmul.f32 %v1448, %v1466
        %v1471 = vcombine.low %v1467, %v1469
        %v1472 = vcombine.high %v1467, %v1469
        %v1474 = vunpack.c.l.s4 1983009808
        %v1475 = vunpack.c.0.s8 %v1474
        %v1476 = vlaneseq
        %v1477 = vshrl.u32 %v1476, 7
        %v1478 = vsub.s32 %v1475, %v1477
        %v1479 = vrot.slane %v1471, %v1478
        %v1481 = vunpack.c.l.s4 1983009808
        %v1482 = vunpack.c.0.s8 %v1481
        %v1483 = vlaneseq
        %v1484 = vshrl.u32 %v1483, 7
        %v1485 = vsub.s32 %v1482, %v1484
        %v1486 = vrot.slane %v1472, %v1485
        %v1487 = vcombine.low %v1468, %v1470
        %v1488 = vcombine.high %v1468, %v1470
        %v1490 = vunpack.c.l.s4 1983009808
        %v1491 = vunpack.c.0.s8 %v1490
        %v1492 = vlaneseq
        %v1493 = vshrl.u32 %v1492, 7
        %v1494 = vsub.s32 %v1491, %v1493
        %v1495 = vrot.slane %v1487, %v1494
        %v1497 = vunpack.c.l.s4 1983009808
        %v1498 = vunpack.c.0.s8 %v1497
        %v1499 = vlaneseq
        %v1500 = vshrl.u32 %v1499, 7
        %v1501 = vsub.s32 %v1498, %v1500
        %v1502 = vrot.slane %v1488, %v1501
        %v1503 = vcombine.low %v1479, %v1495
        %v1504 = vcombine.high %v1479, %v1495
        %v1506 = vunpack.c.l.s4 1934713408
        %v1507 = vunpack.c.0.s8 %v1506
        %v1508 = vlaneseq
        %v1509 = vshrl.u32 %v1508, 7
        %v1510 = vsub.s32 %v1507, %v1509
        %v1511 = vrot.slane %v1503, %v1510
        %v1513 = vunpack.c.l.s4 1934713408
        %v1514 = vunpack.c.0.s8 %v1513
        %v1515 = vlaneseq
        %v1516 = vshrl.u32 %v1515, 7
        %v1517 = vsub.s32 %v1514, %v1516
        %v1518 = vrot.slane %v1504, %v1517
        %v1519 = vcombine.low %v1486, %v1502
        %v1520 = vcombine.high %v1486, %v1502
        %v1522 = vunpack.c.l.s4 1934713408
        %v1523 = vunpack.c.0.s8 %v1522
        %v1524 = vlaneseq
        %v1525 = vshrl.u32 %v1524, 7
        %v1526 = vsub.s32 %v1523, %v1525
        %v1527 = vrot.slane %v1519, %v1526
        %v1529 = vunpack.c.l.s4 1934713408
        %v1530 = vunpack.c.0.s8 %v1529
        %v1531 = vlaneseq
        %v1532 = vshrl.u32 %v1531, 7
        %v1533 = vsub.s32 %v1530, %v1532
        %v1534 = vrot.slane %v1520, %v1533
        %v1535 = vcombine.high %v1511, 0.0
        %v1536 = vcombine.high %v1518, 0.0
        %v1537 = vcombine.high %v1527, 0.0
        %v1538 = vcombine.high %v1534, 0.0
        %v1539 = vcombine.low %v1511, %v1518
        %v1541 = vunpack.c.l.s4 1983009808
        %v1542 = vunpack.c.0.s8 %v1541
        %v1543 = vlaneseq
        %v1544 = vshrl.u32 %v1543, 7
        %v1545 = vsub.s32 %v1542, %v1544
        %v1546 = vrot.slane %v1539, %v1545
        %v1547 = vcombine.low %v1535, %v1536
        %v1549 = vunpack.c.l.s4 1983009808
        %v1550 = vunpack.c.0.s8 %v1549
        %v1551 = vlaneseq
        %v1552 = vshrl.u32 %v1551, 7
        %v1553 = vsub.s32 %v1550, %v1552
        %v1554 = vrot.slane %v1547, %v1553
        %v1555 = vcombine.low %v1527, %v1534
        %v1557 = vunpack.c.l.s4 1983009808
        %v1558 = vunpack.c.0.s8 %v1557
        %v1559 = vlaneseq
        %v1560 = vshrl.u32 %v1559, 7
        %v1561 = vsub.s32 %v1558, %v1560
        %v1562 = vrot.slane %v1555, %v1561
        %v1563 = vcombine.low %v1537, %v1538
        %v1565 = vunpack.c.l.s4 1983009808
        %v1566 = vunpack.c.0.s8 %v1565
        %v1567 = vlaneseq
        %v1568 = vshrl.u32 %v1567, 7
        %v1569 = vsub.s32 %v1566, %v1568
        %v1570 = vrot.slane %v1563, %v1569
        %v1571 = vcombine.low %v1546, %v1554
        %v1572 = vcombine.high %v1546, %v1554
        %v1574 = vunpack.c.l.s4 1934713408
        %v1575 = vunpack.c.0.s8 %v1574
        %v1576 = vlaneseq
        %v1577 = vshrl.u32 %v1576, 7
        %v1578 = vsub.s32 %v1575, %v1577
        %v1579 = vrot.slane %v1571, %v1578
        %v1581 = vunpack.c.l.s4 1934713408
        %v1582 = vunpack.c.0.s8 %v1581
        %v1583 = vlaneseq
        %v1584 = vshrl.u32 %v1583, 7
        %v1585 = vsub.s32 %v1582, %v1584
        %v1586 = vrot.slane %v1572, %v1585
        %v1587 = vcombine.low %v1562, %v1570
        %v1588 = vcombine.high %v1562, %v1570
        %v1590 = vunpack.c.l.s4 1934713408
        %v1591 = vunpack.c.0.s8 %v1590
        %v1592 = vlaneseq
        %v1593 = vshrl.u32 %v1592, 7
        %v1594 = vsub.s32 %v1591, %v1593
        %v1595 = vrot.slane %v1587, %v1594
        %v1597 = vunpack.c.l.s4 1934713408
        %v1598 = vunpack.c.0.s8 %v1597
        %v1599 = vlaneseq
        %v1600 = vshrl.u32 %v1599, 7
        %v1601 = vsub.s32 %v1598, %v1600
        %v1602 = vrot.slane %v1588, %v1601
        %v1603 = vcombine.low %v1579, %v1595
        %v1604 = vcombine.high %v1579, %v1595
        %v1605 = vcombine.low %v1586, %v1602
        %v1606 = vcombine.high %v1586, %v1602
        %1608 = vrot.lane.b32.xlu0 %v1604, 32
        %v1609 = vpop.permute.xlu0 %1608
        %1612 = vrot.lane.b32.xlu0 %v1605, 64
        %v1613 = vpop.permute.xlu0 %1612
        %1616 = vrot.lane.b32.xlu0 %v1606, 96
        %v1617 = vpop.permute.xlu0 %1616
        %v1619 = vsel %vm231, %v1603, %v1609
        %vm1620 = vcmask 523264
        %v1621 = vsel %vm1620, %v1619, %v1613
        %vm1622 = vcmask 785408
        %v1623 = vsel %vm1622, %v1621, %v1617
        %1624 = vst [vmem:[%s200] sm:$0xff] %v1623
        %s1625 = sand.u32 %s97, 1
        %s1626 = scalar_lea.sflag [#allocation4], %s1625
        %s1627 = sand.u32 %s97, 1
        %s1628 = smul.addr %s1627, 8
        %s1629 = scalar_lea.vmem [#allocation7], %s1628
        // Predicated region
        $region41: #{tpu_custom_call.1} parent=31 // pred_check
          %p1630 = pneg %p107
        $region42: #{tpu_custom_call.1} parent=31 // pred_check_branch
          %1632 = sbr.rel (%p1630) target = $region44
        $region43: #{tpu_custom_call.1} parent=31 // pred_region
          %s1634 = ssub.s32 128, 128
          %1635 = vsyncadd %s1626, %s1634
          %s1636 = smul.addr %s21, 128
          %s1637 = scalar_lea.hbm %s3, %s1636
          %s1639 = sshll.u32 %s1629, 4
          %s1640 = int_to_ptr.vmem [resolvable:$true] %s1639
          %1642 = dma.vmem_to_hbm [thread:$0]  %s1640, 128, %s1637, %s1626
        $region44: #{tpu_custom_call.1} parent=31 // pred_fallthru
          _
      $region32: #{tpu_custom_call.1} parent=5 // pred_fallthru
        _
      %p1643 = scmp.le.s32.totalorder 2, %s16
      // Predicated region
      $region45: #{tpu_custom_call.1} parent=5 // pred_check
        %p1644 = pneg %p1643
      $region46: #{tpu_custom_call.1} parent=5 // pred_check_branch
        %1646 = sbr.rel (%p1644) target = $region48
      $region47: #{tpu_custom_call.1} parent=5 // pred_region
        %s1647 = ssub.s32 %s16, 2
        // Predicated region
        $region49: #{tpu_custom_call.1} parent=47 // pred_check
          %p1648 = pneg %p113
        $region50: #{tpu_custom_call.1} parent=47 // pred_check_branch
          %1650 = sbr.rel (%p1648) target = $region52
        $region51: #{tpu_custom_call.1} parent=47 // pred_region
          %s1651 = sand.u32 %s98, 1
          %s1652 = scalar_lea.sflag [#allocation4], %s1651
          %s1653 = sand.u32 %s98, 1
          %s1654 = smul.addr %s1653, 8
          %s1655 = scalar_lea.vmem [#allocation7], %s1654
          %1656 = dma.done %s1652, 128
        $region52: #{tpu_custom_call.1} parent=47 // pred_fallthru
          _
      $region48: #{tpu_custom_call.1} parent=5 // pred_fallthru
        _
    $region6: #{tpu_custom_call.1} parent=1 // loop_footer
      %s20 = sadd.s32 1, %s16
    $region7: #{tpu_custom_call.1} parent=1 // loop_footer_branch
      %15 = sbr.rel target = $region3
    $region8: #{tpu_custom_call.1} parent=1 // loop_exit
      _
    %1657 = vsyncpa [#allocation3], 1
    %s1658 = scalar_lea.sflag [#allocation3], 1
    %1659 = vsyncpa %s1658, 1
    %1660 = vsyncpa [#allocation6], 1
    %1661 = vsyncpa [#allocation4], 1
    %s1662 = scalar_lea.sflag [#allocation4], 1
    %1663 = vsyncpa %s1662, 1

</llo_original>
